<compile_context>
chip_gen: v7x
topology: tpu7x:2x2x1
jax: 0.10.0
libtpu: 0.0.40
codegen_flags: <defaults>
</compile_context>

<pallas_src>
import math
from functools import partial

import jax
import jax.numpy as jnp
from jax import lax
from jax.experimental import pallas as pl
from jax.experimental.pallas import tpu as pltpu


def _silu(x):
    return x * jax.nn.sigmoid(x)


def _pick_tile(n, preferred=256):
    if n <= preferred:
        return n
    for t in (preferred, 128, 64, 32, 16, 8):
        if n % t == 0:
            return t
    return n


# ----------------------------------------------------------------------------
# Kernel 1: per-token projections (RMSNorm + v_proj + fused mx_proj + q/k build,
# with the rotary-bias factors folded into q/k as extra feature columns).
# Grid: (B, T // TT), both axes "parallel".
# ----------------------------------------------------------------------------
def proj_kernel(scaling, eps, D, Z, H,
                x_ref, mx_ref, ra_ref, rb_ref, g_ref, wv_ref, bv_ref,
                wfu_ref, bfu_ref, gb_ref,
                v_ref, qa_ref, ka_ref, u_ref, r_ref, hx_ref):
    x = x_ref[...]                                                   # (TT, D) residual
    # FusedRMSNorm(embed_dim, eps=1e-5)
    xn = x * lax.rsqrt(jnp.mean(x * x, axis=-1, keepdims=True) + eps) * g_ref[...]
    # v = silu(v_proj(norm(x)))  — bf16 MXU, f32 accumulate
    v = _silu(jnp.dot(xn.astype(jnp.bfloat16), wv_ref[...],
                      preferred_element_type=jnp.float32) + bv_ref[...])
    # mx = silu(S6(norm(x)))  (S6 scan computed in glue; silu + projections here)
    mx = _silu(mx_ref[...])
    # fused mx_proj: one wide matmul, then slice into [u | z | r | hx]
    # NOTE: at production embed dims (multiples of 128) these lane slices are aligned;
    # at the toy sizes below they just trigger cheap relayouts.
    base = jnp.dot(mx.astype(jnp.bfloat16), wfu_ref[...],
                   preferred_element_type=jnp.float32) + bfu_ref[...]
    u = jax.nn.sigmoid(base[:, :D])
    zr = _silu(base[:, D:D + Z + H])
    z = zr[:, :Z]
    r = zr[:, Z:]
    hx = base[:, D + Z + H:]
    # q, k from z via packed gamma/beta rows [gq; betaq; gk; betak]; q pre-scaled.
    gb = gb_ref[...]
    q = (z * gb[0:1, :] + gb[1:2, :]) * scaling
    k = z * gb[2:3, :] + gb[3:4, :]
    # Fold the factored rotary relative bias into q/k:
    #   [q | rot_a] . [k | rot_b]^T = q.k + rot_a.rot_b  (bias un-scaled, as in torch)
    q_aug = jnp.concatenate([q, ra_ref[...].astype(jnp.float32)], axis=-1)
    k_aug = jnp.concatenate([k, rb_ref[...].astype(jnp.float32)], axis=-1)
    v_ref[...] = v.astype(v_ref.dtype)
    qa_ref[...] = q_aug.astype(qa_ref.dtype)
    ka_ref[...] = k_aug.astype(ka_ref.dtype)
    u_ref[...] = u
    r_ref[...] = r
    hx_ref[...] = hx


# ----------------------------------------------------------------------------
# Kernel 2: flash-style causal attention (online softmax over KV tiles), then
# h_proj + output gating on the last KV step.
# Grid: (B, T // TQ, T // TK) -> ("parallel", "parallel", "arbitrary").
# ----------------------------------------------------------------------------
def attn_kernel(TQ, TK,
                q_ref, k_ref, v_ref, x_ref, u_ref, r_ref, hx_ref, wh_ref, bh_ref,
                out_ref, m_sc, l_sc, acc_sc):
    ki = pl.program_id(2)
    nk = pl.num_programs(2)

    @pl.when(ki == 0)
    def _():
        m_sc[...] = jnp.full_like(m_sc, -jnp.inf)
        l_sc[...] = jnp.zeros_like(l_sc)
        acc_sc[...] = jnp.zeros_like(acc_sc)

    q_start = pl.program_id(1) * TQ
    k_start = ki * TK
    nt = (((1,), (1,)), ((), ()))   # contract last dims, no transpose materialized

    # Skip KV blocks that lie entirely above the causal diagonal (their DMAs are
    # already elided by the clamped index_map in the wrapper).
    @pl.when(k_start < q_start + TQ)
    def _():
        # single dot: qk (pre-scaled q) + rotary relative bias (folded columns)
        s = lax.dot_general(q_ref[...], k_ref[...], nt,
                            preferred_element_type=jnp.float32)
        # causal mask generated in-kernel (key 0 is always visible, so no NaN rows)
        rows = q_start + lax.broadcasted_iota(jnp.int32, (TQ, TK), 0)
        cols = k_start + lax.broadcasted_iota(jnp.int32, (TQ, TK), 1)
        s = jnp.where(rows >= cols, s, -jnp.inf)
        # online softmax update
        m_prev = m_sc[...]
        m_new = jnp.maximum(m_prev, jnp.max(s, axis=-1, keepdims=True))
        a = jnp.exp(m_prev - m_new)
        p = jnp.exp(s - m_new)
        l_sc[...] = a * l_sc[...] + jnp.sum(p, axis=-1, keepdims=True)
        acc_sc[...] = a * acc_sc[...] + jnp.dot(p.astype(v_ref.dtype), v_ref[...],
                                                preferred_element_type=jnp.float32)
        m_sc[...] = m_new

    @pl.when(ki == nk - 1)
    def _():
        h = acc_sc[...] * pl.reciprocal(l_sc[...], approx=True)      # (TQ, H)
        # h = silu(hx + h_proj(h * r))
        hr = (h * r_ref[...]).astype(wh_ref.dtype)
        h2 = _silu(hx_ref[...] + jnp.dot(hr, wh_ref[...],
                                         preferred_element_type=jnp.float32) + bh_ref[...])
        # out = addcmul(residual, u, h - residual)
        xr = x_ref[...]
        out_ref[...] = (xr + u_ref[...] * (h2 - xr)).astype(out_ref.dtype)


# ----------------------------------------------------------------------------
# Glue: RMSNorm, S6 selective scan, rotary bias factors, wrapper.
# ----------------------------------------------------------------------------
def rmsnorm(x, g, eps=1e-5):
    return x * lax.rsqrt(jnp.mean(x * x, axis=-1, keepdims=True) + eps) * g


def s6_forward(x, p):
    # TODO(synk): the S6 class definition is not provided in the reference source; this is
    # the canonical Mamba-style selective scan (delta=softplus(x@Wd), B=x@WB, C=x@WC,
    # h_t = exp(delta*A) h_{t-1} + (delta*B) x_t, y_t = h_t . C_t) with diagonal A,
    # kept in plain JAX (sequential lax.scan) — the main remaining bottleneck at large T.
    delta = jax.nn.softplus(x @ p["Wd"] + p["bd"])                   # (B, T, D)
    Bm = x @ p["WB"] + p["bB"]                                       # (B, T, N)
    Cm = x @ p["WC"] + p["bC"]                                       # (B, T, N)
    dA = jnp.exp(delta[..., None] * p["A"][None, None])              # (B, T, D, N)
    dBx = delta[..., None] * Bm[:, :, None, :] * x[..., None]        # (B, T, D, N)

    def step(h, inp):
        dA_t, dBx_t, C_t = inp
        h = dA_t * h + dBx_t
        y = jnp.einsum("bdn,bn->bd", h, C_t)
        return h, y

    Bsz, T, D = x.shape
    N = p["A"].shape[1]
    h0 = jnp.zeros((Bsz, D, N), x.dtype)
    _, ys = lax.scan(step, h0, (dA.transpose(1, 0, 2, 3),
                                dBx.transpose(1, 0, 2, 3),
                                Cm.transpose(1, 0, 2)))
    return ys.transpose(1, 0, 2)                                     # (B, T, D)


def rotary_embed(p, seq_len, zdim):
    # rot(param) from RotaryRelativePositionalBias; bias = rot(alpha) @ rot(beta).T,
    # kept factored as two (T, Z) tensors instead of a dense (T, T) table.
    half = zdim // 2
    scale = math.log(10000.0) / half
    inv = jnp.exp(jnp.arange(half, dtype=jnp.float32) * (-scale))
    pos = jnp.arange(seq_len, dtype=jnp.float32)[:, None] * inv[None, :]
    sin, cos = jnp.sin(pos), jnp.cos(pos)
    pe = jnp.broadcast_to(p, (seq_len, zdim))
    p1, p2 = pe[:, :half], pe[:, half:]
    return jnp.concatenate([p1 * cos - p2 * sin, p2 * cos + p1 * sin], axis=-1)


def s6_gated_attention(x, params, zdim):
    B, T, D = x.shape
    Z = zdim
    H = D
    DO = D + Z + H + D
    scaling = float(Z) ** (-0.5)
    eps = 1e-5
    f32 = jnp.float32
    bf16 = jnp.bfloat16

    # ---- glue (plain JAX): S6 scan + rotary bias factors + parameter packing ----
    xn = rmsnorm(x, params["g_norm"], eps)
    mx_raw = s6_forward(xn, params)                                  # (B, T, D), pre-silu

    rot_a = rotary_embed(params["alpha"], T, Z)                      # (T, Z)
    rot_b = rotary_embed(params["beta_rot"], T, Z)                   # (T, Z)

    # Fused mx_proj [u | z | r | hx] -> one wide bf16 matmul; packed gamma/beta.
    w_fused = jnp.concatenate([params["Wu"], params["Wz"], params["Wr"], params["Whx"]],
                              axis=1).astype(bf16)                   # (D, DO)
    b_fused = jnp.concatenate([params["bu"], params["bz"], params["br"], params["bhx"]],
                              axis=1)                                # (1, DO)
    gb = jnp.concatenate([params["gq"], params["betaq"], params["gk"], params["betak"]],
                         axis=0)                                     # (4, Z)
    wv = params["Wv"].astype(bf16)
    wh = params["Wh"].astype(bf16)

    TT = _pick_tile(T)   # token tile (projections)
    TQ = _pick_tile(T)   # query tile (attention)
    TK = _pick_tile(T)   # kv tile (attention)
    # NOTE: at these toy feature sizes (D=32, Z=16) the lane axis is under-filled;
    # production embed dims (>=128) make every block lane-dense with the same specs.

    # ---- kernel 1: RMSNorm + v_proj + fused mx_proj + q/k construction ----
    proj = partial(proj_kernel, scaling, eps, D, Z, H)
    v, q_aug, k_aug, u, r, hx = pl.pallas_call(
        proj,
        grid=(B, T // TT),
        in_specs=[
            pl.BlockSpec((None, TT, D), lambda b, t: (b, t, 0)),     # x (residual)
            pl.BlockSpec((None, TT, D), lambda b, t: (b, t, 0)),     # S6 output (pre-silu)
            pl.BlockSpec((TT, Z), lambda b, t: (t, 0)),              # rot(alpha) rows
            pl.BlockSpec((TT, Z), lambda b, t: (t, 0)),              # rot(beta) rows
            pl.BlockSpec((1, D), lambda b, t: (0, 0)),               # RMSNorm weight
            pl.BlockSpec((D, H), lambda b, t: (0, 0)),               # Wv (bf16)
            pl.BlockSpec((1, H), lambda b, t: (0, 0)),               # bv
            pl.BlockSpec((D, DO), lambda b, t: (0, 0)),              # fused mx_proj W (bf16)
            pl.BlockSpec((1, DO), lambda b, t: (0, 0)),              # fused mx_proj b
            pl.BlockSpec((4, Z), lambda b, t: (0, 0)),               # [gq; betaq; gk; betak]
        ],
        out_specs=[
            pl.BlockSpec((None, TT, H), lambda b, t: (b, t, 0)),     # v      (bf16)
            pl.BlockSpec((None, TT, 2 * Z), lambda b, t: (b, t, 0)), # [q|ra] (bf16, scaled)
            pl.BlockSpec((None, TT, 2 * Z), lambda b, t: (b, t, 0)), # [k|rb] (bf16)
            pl.BlockSpec((None, TT, D), lambda b, t: (b, t, 0)),     # u
            pl.BlockSpec((None, TT, H), lambda b, t: (b, t, 0)),     # r
            pl.BlockSpec((None, TT, D), lambda b, t: (b, t, 0)),     # hx
        ],
        out_shape=[
            jax.ShapeDtypeStruct((B, T, H), bf16),
            jax.ShapeDtypeStruct((B, T, 2 * Z), bf16),
            jax.ShapeDtypeStruct((B, T, 2 * Z), bf16),
            jax.ShapeDtypeStruct((B, T, D), f32),
            jax.ShapeDtypeStruct((B, T, H), f32),
            jax.ShapeDtypeStruct((B, T, D), f32),
        ],
        compiler_params=pltpu.CompilerParams(
            dimension_semantics=("parallel", "parallel")),
    )(x, mx_raw, rot_a, rot_b, params["g_norm"], wv, params["bv"],
      w_fused, b_fused, gb)

    # ---- kernel 2: flash-style causal attention + h_proj + output gating ----
    # Clamp the KV block index to the last causally-visible block: above-diagonal
    # blocks remap to an already-resident block, so Pallas elides their DMAs (the
    # compute for those steps is skipped by pl.when inside the kernel).
    def kv_map(b, qi, ki):
        return (b, jnp.minimum(ki, ((qi + 1) * TQ - 1) // TK), 0)

    attn = partial(attn_kernel, TQ, TK)
    out = pl.pallas_call(
        attn,
        grid=(B, T // TQ, T // TK),
        in_specs=[
            pl.BlockSpec((None, TQ, 2 * Z), lambda b, qi, ki: (b, qi, 0)),  # [q|ra]
            pl.BlockSpec((None, TK, 2 * Z), kv_map),                        # [k|rb]
            pl.BlockSpec((None, TK, H), kv_map),                            # v
            pl.BlockSpec((None, TQ, D), lambda b, qi, ki: (b, qi, 0)),      # x (residual)
            pl.BlockSpec((None, TQ, D), lambda b, qi, ki: (b, qi, 0)),      # u
            pl.BlockSpec((None, TQ, H), lambda b, qi, ki: (b, qi, 0)),      # r
            pl.BlockSpec((None, TQ, D), lambda b, qi, ki: (b, qi, 0)),      # hx
            pl.BlockSpec((H, D), lambda b, qi, ki: (0, 0)),                 # Wh (bf16)
            pl.BlockSpec((1, D), lambda b, qi, ki: (0, 0)),                 # bh
        ],
        out_specs=pl.BlockSpec((None, TQ, D), lambda b, qi, ki: (b, qi, 0)),
        out_shape=jax.ShapeDtypeStruct((B, T, D), f32),
        scratch_shapes=[
            pltpu.VMEM((TQ, 1), f32),    # running max
            pltpu.VMEM((TQ, 1), f32),    # running denominator
            pltpu.VMEM((TQ, H), f32),    # output accumulator
        ],
        compiler_params=pltpu.CompilerParams(
            dimension_semantics=("parallel", "parallel", "arbitrary")),
    )(q_aug, k_aug, v, x, u, r, hx, wh, params["bh"])
    return out


# ----------------------------------------------------------------------------
# Pure-JAX reference (same math, f32, no Pallas) for correctness checking.
# ----------------------------------------------------------------------------
def reference_forward(x, params, zdim):
    eps = 1e-5
    Z = zdim
    xn = rmsnorm(x, params["g_norm"], eps)
    v = jax.nn.silu(xn @ params["Wv"] + params["bv"])
    mx = jax.nn.silu(s6_forward(xn, params))
    u = jax.nn.sigmoid(mx @ params["Wu"] + params["bu"])
    z = jax.nn.silu(mx @ params["Wz"] + params["bz"])
    r = jax.nn.silu(mx @ params["Wr"] + params["br"])
    hx = mx @ params["Whx"] + params["bhx"]
    q = (z * params["gq"] + params["betaq"]) * (float(Z) ** -0.5)
    k = z * params["gk"] + params["betak"]
    T = x.shape[1]
    a = rotary_embed(params["alpha"], T, Z)
    b = rotary_embed(params["beta_rot"], T, Z)
    bias = a @ b.T
    causal = jnp.triu(jnp.full((T, T), -jnp.inf, jnp.float32), 1)
    qk = jnp.einsum("btz,bsz->bts", q, k) + bias + causal
    attn = jax.nn.softmax(qk, axis=-1)
    h = jnp.einsum("bts,bsh->bth", attn, v)
    h = jax.nn.silu(hx + (h * r) @ params["Wh"] + params["bh"])
    return x + u * (h - x)


# ----------------------------------------------------------------------------
# Main
# ----------------------------------------------------------------------------
if __name__ == "__main__":
    # Small shapes: embed_dim=32, zdim=16, ndim(S6 state)=16, batch=2, seq=8,
    # chunk_size=2048 (default) > seq_len -> single-chunk attention path.
    B, T, D, Z, N = 2, 8, 32, 16, 16
    H = D
    std = 0.02

    key = jax.random.PRNGKey(0)
    ks = jax.random.split(key, 16)

    x = jax.random.normal(ks[0], (B, T, D), jnp.float32)

    params = {
        # FusedRMSNorm weight (apex default init = ones)
        "g_norm": jnp.ones((1, D), jnp.float32),
        # v_proj
        "Wv": jax.random.normal(ks[1], (D, H), jnp.float32) * std,
        "bv": jnp.zeros((1, H), jnp.float32),
        # mx_proj split into [u | z | r | hx] column blocks (Linear: D -> Z + H + 2D)
        "Wu": jax.random.normal(ks[2], (D, D), jnp.float32) * std,
        "bu": jnp.zeros((1, D), jnp.float32),
        "Wz": jax.random.normal(ks[3], (D, Z), jnp.float32) * std,
        "bz": jnp.zeros((1, Z), jnp.float32),
        "Wr": jax.random.normal(ks[4], (D, H), jnp.float32) * std,
        "br": jnp.zeros((1, H), jnp.float32),
        "Whx": jax.random.normal(ks[5], (D, D), jnp.float32) * std,
        "bhx": jnp.zeros((1, D), jnp.float32),
        # gamma / beta (shape (2, Z) in torch; stored as q/k rows)
        "gq": jax.random.normal(ks[6], (1, Z), jnp.float32) * std,
        "gk": jax.random.normal(ks[7], (1, Z), jnp.float32) * std,
        "betaq": jnp.zeros((1, Z), jnp.float32),
        "betak": jnp.zeros((1, Z), jnp.float32),
        # h_proj
        "Wh": jax.random.normal(ks[8], (H, D), jnp.float32) * std,
        "bh": jnp.zeros((1, D), jnp.float32),
        # rotary relative positional bias params (alpha/beta, shape (1, zdim))
        "alpha": jax.random.normal(ks[9], (1, Z), jnp.float32) * std,
        "beta_rot": jax.random.normal(ks[10], (1, Z), jnp.float32) * std,
        # S6 (selective scan) params
        "Wd": jax.random.normal(ks[11], (D, D), jnp.float32) * std,
        "bd": jnp.zeros((D,), jnp.float32),
        "WB": jax.random.normal(ks[12], (D, N), jnp.float32) * std,
        "bB": jnp.zeros((N,), jnp.float32),
        "WC": jax.random.normal(ks[13], (D, N), jnp.float32) * std,
        "bC": jnp.zeros((N,), jnp.float32),
        "A": -jnp.broadcast_to(jnp.arange(1, N + 1, dtype=jnp.float32), (D, N)),
    }

    out = s6_gated_attention(x, params, Z)
    out = jax.block_until_ready(out)

    ref = reference_forward(x, params, Z)
    max_diff = float(jnp.max(jnp.abs(out - ref)))
    assert out.shape == (B, T, D)
    assert jnp.isfinite(out).all()
    assert max_diff < 2e-3, f"mismatch vs reference: max |diff| = {max_diff}"

    print("KERNEL_OK")
</pallas_src>

<mosaic_0001>
module attributes {stable_mosaic.version = 11 : i64} {
  func.func @proj_kernel(%arg0: i32, %arg1: i32, %arg2: memref<1x8x32xf32, #tpu.memory_space<vmem>>, %arg3: memref<1x8x32xf32, #tpu.memory_space<vmem>>, %arg4: memref<8x16xf32, #tpu.memory_space<vmem>>, %arg5: memref<8x16xf32, #tpu.memory_space<vmem>>, %arg6: memref<1x32xf32, #tpu.memory_space<vmem>>, %arg7: memref<32x32xbf16, #tpu.memory_space<vmem>>, %arg8: memref<1x32xf32, #tpu.memory_space<vmem>>, %arg9: memref<32x112xbf16, #tpu.memory_space<vmem>>, %arg10: memref<1x112xf32, #tpu.memory_space<vmem>>, %arg11: memref<4x16xf32, #tpu.memory_space<vmem>>, %arg12: memref<1x8x32xbf16, #tpu.memory_space<vmem>>, %arg13: memref<1x8x32xbf16, #tpu.memory_space<vmem>>, %arg14: memref<1x8x32xbf16, #tpu.memory_space<vmem>>, %arg15: memref<1x8x32xf32, #tpu.memory_space<vmem>>, %arg16: memref<1x8x32xf32, #tpu.memory_space<vmem>>, %arg17: memref<1x8x32xf32, #tpu.memory_space<vmem>>) attributes {dimension_semantics = [#tpu.dimension_semantics<parallel>, #tpu.dimension_semantics<parallel>], iteration_bounds = array<i64: 2, 1>, scalar_prefetch = 0 : i64, scratch_operands = 0 : i64, tpu.core_type = #tpu.core_type<tc>, window_params = [{transform_indices = @transform_0, window_bounds = array<i64: 1, 8, 32>}, {transform_indices = @transform_1, window_bounds = array<i64: 1, 8, 32>}, {transform_indices = @transform_2, window_bounds = array<i64: 8, 16>}, {transform_indices = @transform_3, window_bounds = array<i64: 8, 16>}, {pipeline_mode = #tpu.pipeline_mode<synchronous>, transform_indices = @transform_4, window_bounds = array<i64: 1, 32>}, {pipeline_mode = #tpu.pipeline_mode<synchronous>, transform_indices = @transform_5, window_bounds = array<i64: 32, 32>}, {pipeline_mode = #tpu.pipeline_mode<synchronous>, transform_indices = @transform_6, window_bounds = array<i64: 1, 32>}, {pipeline_mode = #tpu.pipeline_mode<synchronous>, transform_indices = @transform_7, window_bounds = array<i64: 32, 112>}, {pipeline_mode = #tpu.pipeline_mode<synchronous>, transform_indices = @transform_8, window_bounds = array<i64: 1, 112>}, {pipeline_mode = #tpu.pipeline_mode<synchronous>, transform_indices = @transform_9, window_bounds = array<i64: 4, 16>}, {transform_indices = @transform_10, window_bounds = array<i64: 1, 8, 32>}, {transform_indices = @transform_11, window_bounds = array<i64: 1, 8, 32>}, {transform_indices = @transform_12, window_bounds = array<i64: 1, 8, 32>}, {transform_indices = @transform_13, window_bounds = array<i64: 1, 8, 32>}, {transform_indices = @transform_14, window_bounds = array<i64: 1, 8, 32>}, {transform_indices = @transform_15, window_bounds = array<i64: 1, 8, 32>}]} {
    %c0 = arith.constant 0 : index
    %c0_0 = arith.constant 0 : index
    %c0_1 = arith.constant 0 : index
    %0 = vector.load %arg2[%c0, %c0_0, %c0_1] : memref<1x8x32xf32, #tpu.memory_space<vmem>>, vector<1x8x32xf32>
    %1 = vector.shape_cast %0 : vector<1x8x32xf32> to vector<8x32xf32>
    %2 = arith.mulf %1, %1 : vector<8x32xf32>
    %cst = arith.constant dense<0.000000e+00> : vector<8xf32>
    %3 = vector.multi_reduction <add>, %2, %cst [1] : vector<8x32xf32> to vector<8xf32>
    %4 = vector.shape_cast %3 : vector<8xf32> to vector<8x1xf32>
    %cst_2 = arith.constant 3.200000e+01 : f32
    %5 = vector.broadcast %cst_2 : f32 to vector<8x1xf32>
    %6 = arith.divf %4, %5 : vector<8x1xf32>
    %cst_3 = arith.constant 9.99999974E-6 : f32
    %7 = vector.broadcast %cst_3 : f32 to vector<8x1xf32>
    %8 = arith.addf %6, %7 : vector<8x1xf32>
    %9 = math.rsqrt %8 : vector<8x1xf32>
    %10 = vector.broadcast %9 : vector<8x1xf32> to vector<8x32xf32>
    %11 = arith.mulf %1, %10 : vector<8x32xf32>
    %c0_4 = arith.constant 0 : index
    %c0_5 = arith.constant 0 : index
    %12 = vector.load %arg6[%c0_4, %c0_5] : memref<1x32xf32, #tpu.memory_space<vmem>>, vector<1x32xf32>
    %13 = vector.broadcast %12 : vector<1x32xf32> to vector<8x32xf32>
    %14 = arith.mulf %11, %13 : vector<8x32xf32>
    %15 = arith.truncf %14 : vector<8x32xf32> to vector<8x32xbf16>
    %c0_6 = arith.constant 0 : index
    %c0_7 = arith.constant 0 : index
    %16 = vector.load %arg7[%c0_6, %c0_7] : memref<32x32xbf16, #tpu.memory_space<vmem>>, vector<32x32xbf16>
    %cst_8 = arith.constant dense<0.000000e+00> : vector<8x32xf32>
    %17 = tpu.matmul %15, %16, %cst_8 {dimension_numbers = #tpu.dot_dimension_numbers<[1], [0], [0], [1], [0, 0, 1, 1], [], []>} : vector<8x32xbf16>, vector<32x32xbf16>, vector<8x32xf32> -> vector<8x32xf32>
    %c0_9 = arith.constant 0 : index
    %c0_10 = arith.constant 0 : index
    %18 = vector.load %arg8[%c0_9, %c0_10] : memref<1x32xf32, #tpu.memory_space<vmem>>, vector<1x32xf32>
    %19 = vector.broadcast %18 : vector<1x32xf32> to vector<8x32xf32>
    %20 = arith.addf %17, %19 : vector<8x32xf32>
    %21 = arith.negf %20 : vector<8x32xf32>
    %22 = math.exp %21 : vector<8x32xf32>
    %cst_11 = arith.constant 1.000000e+00 : f32
    %23 = vector.broadcast %cst_11 : f32 to vector<8x32xf32>
    %24 = arith.addf %23, %22 : vector<8x32xf32>
    %25 = arith.divf %23, %24 : vector<8x32xf32>
    %26 = arith.mulf %20, %25 : vector<8x32xf32>
    %c0_12 = arith.constant 0 : index
    %c0_13 = arith.constant 0 : index
    %c0_14 = arith.constant 0 : index
    %27 = vector.load %arg3[%c0_12, %c0_13, %c0_14] : memref<1x8x32xf32, #tpu.memory_space<vmem>>, vector<1x8x32xf32>
    %28 = vector.shape_cast %27 : vector<1x8x32xf32> to vector<8x32xf32>
    %29 = arith.negf %28 : vector<8x32xf32>
    %30 = math.exp %29 : vector<8x32xf32>
    %cst_15 = arith.constant 1.000000e+00 : f32
    %31 = vector.broadcast %cst_15 : f32 to vector<8x32xf32>
    %32 = arith.addf %31, %30 : vector<8x32xf32>
    %33 = arith.divf %31, %32 : vector<8x32xf32>
    %34 = arith.mulf %28, %33 : vector<8x32xf32>
    %35 = arith.truncf %34 : vector<8x32xf32> to vector<8x32xbf16>
    %c0_16 = arith.constant 0 : index
    %c0_17 = arith.constant 0 : index
    %36 = vector.load %arg9[%c0_16, %c0_17] : memref<32x112xbf16, #tpu.memory_space<vmem>>, vector<32x112xbf16>
    %cst_18 = arith.constant dense<0.000000e+00> : vector<8x112xf32>
    %37 = tpu.matmul %35, %36, %cst_18 {dimension_numbers = #tpu.dot_dimension_numbers<[1], [0], [0], [1], [0, 0, 1, 1], [], []>} : vector<8x32xbf16>, vector<32x112xbf16>, vector<8x112xf32> -> vector<8x112xf32>
    %c0_19 = arith.constant 0 : index
    %c0_20 = arith.constant 0 : index
    %38 = vector.load %arg10[%c0_19, %c0_20] : memref<1x112xf32, #tpu.memory_space<vmem>>, vector<1x112xf32>
    %39 = vector.broadcast %38 : vector<1x112xf32> to vector<8x112xf32>
    %40 = arith.addf %37, %39 : vector<8x112xf32>
    %41 = vector.extract_strided_slice %40 {offsets = [0, 0], sizes = [8, 32], strides = [1, 1]} : vector<8x112xf32> to vector<8x32xf32>
    %42 = arith.negf %41 : vector<8x32xf32>
    %43 = math.exp %42 : vector<8x32xf32>
    %cst_21 = arith.constant 1.000000e+00 : f32
    %44 = vector.broadcast %cst_21 : f32 to vector<8x32xf32>
    %45 = arith.addf %44, %43 : vector<8x32xf32>
    %46 = arith.divf %44, %45 : vector<8x32xf32>
    %47 = vector.extract_strided_slice %40 {offsets = [0, 32], sizes = [8, 48], strides = [1, 1]} : vector<8x112xf32> to vector<8x48xf32>
    %48 = arith.negf %47 : vector<8x48xf32>
    %49 = math.exp %48 : vector<8x48xf32>
    %cst_22 = arith.constant 1.000000e+00 : f32
    %50 = vector.broadcast %cst_22 : f32 to vector<8x48xf32>
    %51 = arith.addf %50, %49 : vector<8x48xf32>
    %52 = arith.divf %50, %51 : vector<8x48xf32>
    %53 = arith.mulf %47, %52 : vector<8x48xf32>
    %54 = vector.extract_strided_slice %53 {offsets = [0, 0], sizes = [8, 16], strides = [1, 1]} : vector<8x48xf32> to vector<8x16xf32>
    %55 = vector.extract_strided_slice %53 {offsets = [0, 16], sizes = [8, 32], strides = [1, 1]} : vector<8x48xf32> to vector<8x32xf32>
    %56 = vector.extract_strided_slice %40 {offsets = [0, 80], sizes = [8, 32], strides = [1, 1]} : vector<8x112xf32> to vector<8x32xf32>
    %c0_23 = arith.constant 0 : index
    %c0_24 = arith.constant 0 : index
    %57 = vector.load %arg11[%c0_23, %c0_24] : memref<4x16xf32, #tpu.memory_space<vmem>>, vector<4x16xf32>
    %58 = vector.extract_strided_slice %57 {offsets = [0, 0], sizes = [1, 16], strides = [1, 1]} : vector<4x16xf32> to vector<1x16xf32>
    %59 = vector.broadcast %58 : vector<1x16xf32> to vector<8x16xf32>
    %60 = arith.mulf %54, %59 : vector<8x16xf32>
    %61 = vector.extract_strided_slice %57 {offsets = [1, 0], sizes = [1, 16], strides = [1, 1]} : vector<4x16xf32> to vector<1x16xf32>
    %62 = vector.broadcast %61 : vector<1x16xf32> to vector<8x16xf32>
    %63 = arith.addf %60, %62 : vector<8x16xf32>
    %cst_25 = arith.constant 2.500000e-01 : f32
    %64 = vector.broadcast %cst_25 : f32 to vector<8x16xf32>
    %65 = arith.mulf %63, %64 : vector<8x16xf32>
    %66 = vector.extract_strided_slice %57 {offsets = [2, 0], sizes = [1, 16], strides = [1, 1]} : vector<4x16xf32> to vector<1x16xf32>
    %67 = vector.broadcast %66 : vector<1x16xf32> to vector<8x16xf32>
    %68 = arith.mulf %54, %67 : vector<8x16xf32>
    %69 = vector.extract_strided_slice %57 {offsets = [3, 0], sizes = [1, 16], strides = [1, 1]} : vector<4x16xf32> to vector<1x16xf32>
    %70 = vector.broadcast %69 : vector<1x16xf32> to vector<8x16xf32>
    %71 = arith.addf %68, %70 : vector<8x16xf32>
    %c0_26 = arith.constant 0 : index
    %c0_27 = arith.constant 0 : index
    %72 = vector.load %arg4[%c0_26, %c0_27] : memref<8x16xf32, #tpu.memory_space<vmem>>, vector<8x16xf32>
    %73 = tpu.concatenate %65, %72 in 1 : vector<8x16xf32>, vector<8x16xf32> -> vector<8x32xf32>
    %c0_28 = arith.constant 0 : index
    %c0_29 = arith.constant 0 : index
    %74 = vector.load %arg5[%c0_28, %c0_29] : memref<8x16xf32, #tpu.memory_space<vmem>>, vector<8x16xf32>
    %75 = tpu.concatenate %71, %74 in 1 : vector<8x16xf32>, vector<8x16xf32> -> vector<8x32xf32>
    %76 = arith.truncf %26 : vector<8x32xf32> to vector<8x32xbf16>
    %c0_30 = arith.constant 0 : index
    %c0_31 = arith.constant 0 : index
    %c0_32 = arith.constant 0 : index
    %77 = vector.load %arg12[%c0_30, %c0_31, %c0_32] : memref<1x8x32xbf16, #tpu.memory_space<vmem>>, vector<1x8x32xbf16>
    %78 = vector.shape_cast %77 : vector<1x8x32xbf16> to vector<8x32xbf16>
    %79 = vector.shape_cast %76 : vector<8x32xbf16> to vector<1x8x32xbf16>
    tpu.vector_store %arg12[%c0_30, %c0_31, %c0_32], %79 {strides = array<i32>} : memref<1x8x32xbf16, #tpu.memory_space<vmem>>, vector<1x8x32xbf16>,
    %80 = arith.truncf %73 : vector<8x32xf32> to vector<8x32xbf16>
    %c0_33 = arith.constant 0 : index
    %c0_34 = arith.constant 0 : index
    %c0_35 = arith.constant 0 : index
    %81 = vector.load %arg13[%c0_33, %c0_34, %c0_35] : memref<1x8x32xbf16, #tpu.memory_space<vmem>>, vector<1x8x32xbf16>
    %82 = vector.shape_cast %81 : vector<1x8x32xbf16> to vector<8x32xbf16>
    %83 = vector.shape_cast %80 : vector<8x32xbf16> to vector<1x8x32xbf16>
    tpu.vector_store %arg13[%c0_33, %c0_34, %c0_35], %83 {strides = array<i32>} : memref<1x8x32xbf16, #tpu.memory_space<vmem>>, vector<1x8x32xbf16>,
    %84 = arith.truncf %75 : vector<8x32xf32> to vector<8x32xbf16>
    %c0_36 = arith.constant 0 : index
    %c0_37 = arith.constant 0 : index
    %c0_38 = arith.constant 0 : index
    %85 = vector.load %arg14[%c0_36, %c0_37, %c0_38] : memref<1x8x32xbf16, #tpu.memory_space<vmem>>, vector<1x8x32xbf16>
    %86 = vector.shape_cast %85 : vector<1x8x32xbf16> to vector<8x32xbf16>
    %87 = vector.shape_cast %84 : vector<8x32xbf16> to vector<1x8x32xbf16>
    tpu.vector_store %arg14[%c0_36, %c0_37, %c0_38], %87 {strides = array<i32>} : memref<1x8x32xbf16, #tpu.memory_space<vmem>>, vector<1x8x32xbf16>,
    %c0_39 = arith.constant 0 : index
    %c0_40 = arith.constant 0 : index
    %c0_41 = arith.constant 0 : index
    %88 = vector.load %arg15[%c0_39, %c0_40, %c0_41] : memref<1x8x32xf32, #tpu.memory_space<vmem>>, vector<1x8x32xf32>
    %89 = vector.shape_cast %88 : vector<1x8x32xf32> to vector<8x32xf32>
    %90 = vector.shape_cast %46 : vector<8x32xf32> to vector<1x8x32xf32>
    tpu.vector_store %arg15[%c0_39, %c0_40, %c0_41], %90 {strides = array<i32>} : memref<1x8x32xf32, #tpu.memory_space<vmem>>, vector<1x8x32xf32>,
    %c0_42 = arith.constant 0 : index
    %c0_43 = arith.constant 0 : index
    %c0_44 = arith.constant 0 : index
    %91 = vector.load %arg16[%c0_42, %c0_43, %c0_44] : memref<1x8x32xf32, #tpu.memory_space<vmem>>, vector<1x8x32xf32>
    %92 = vector.shape_cast %91 : vector<1x8x32xf32> to vector<8x32xf32>
    %93 = vector.shape_cast %55 : vector<8x32xf32> to vector<1x8x32xf32>
    tpu.vector_store %arg16[%c0_42, %c0_43, %c0_44], %93 {strides = array<i32>} : memref<1x8x32xf32, #tpu.memory_space<vmem>>, vector<1x8x32xf32>,
    %c0_45 = arith.constant 0 : index
    %c0_46 = arith.constant 0 : index
    %c0_47 = arith.constant 0 : index
    %94 = vector.load %arg17[%c0_45, %c0_46, %c0_47] : memref<1x8x32xf32, #tpu.memory_space<vmem>>, vector<1x8x32xf32>
    %95 = vector.shape_cast %94 : vector<1x8x32xf32> to vector<8x32xf32>
    %96 = vector.shape_cast %56 : vector<8x32xf32> to vector<1x8x32xf32>
    tpu.vector_store %arg17[%c0_45, %c0_46, %c0_47], %96 {strides = array<i32>} : memref<1x8x32xf32, #tpu.memory_space<vmem>>, vector<1x8x32xf32>,
    return
  }
  func.func @transform_0(%arg0: i32, %arg1: i32) -> (i32, i32, i32) {
    %c0_i32 = arith.constant 0 : i32
    %c0_i32_0 = arith.constant 0 : i32
    return %arg0, %arg1, %c0_i32 : i32, i32, i32
  }
  func.func @transform_1(%arg0: i32, %arg1: i32) -> (i32, i32, i32) {
    %c0_i32 = arith.constant 0 : i32
    %c0_i32_0 = arith.constant 0 : i32
    return %arg0, %arg1, %c0_i32 : i32, i32, i32
  }
  func.func @transform_2(%arg0: i32, %arg1: i32) -> (i32, i32) {
    %c0_i32 = arith.constant 0 : i32
    %c0_i32_0 = arith.constant 0 : i32
    return %arg1, %c0_i32 : i32, i32
  }
  func.func @transform_3(%arg0: i32, %arg1: i32) -> (i32, i32) {
    %c0_i32 = arith.constant 0 : i32
    %c0_i32_0 = arith.constant 0 : i32
    return %arg1, %c0_i32 : i32, i32
  }
  func.func @transform_4(%arg0: i32, %arg1: i32) -> (i32, i32) {
    %c0_i32 = arith.constant 0 : i32
    %c0_i32_0 = arith.constant 0 : i32
    %c0_i32_1 = arith.constant 0 : i32
    return %c0_i32, %c0_i32_0 : i32, i32
  }
  func.func @transform_5(%arg0: i32, %arg1: i32) -> (i32, i32) {
    %c0_i32 = arith.constant 0 : i32
    %c0_i32_0 = arith.constant 0 : i32
    %c0_i32_1 = arith.constant 0 : i32
    return %c0_i32, %c0_i32_0 : i32, i32
  }
  func.func @transform_6(%arg0: i32, %arg1: i32) -> (i32, i32) {
    %c0_i32 = arith.constant 0 : i32
    %c0_i32_0 = arith.constant 0 : i32
    %c0_i32_1 = arith.constant 0 : i32
    return %c0_i32, %c0_i32_0 : i32, i32
  }
  func.func @transform_7(%arg0: i32, %arg1: i32) -> (i32, i32) {
    %c0_i32 = arith.constant 0 : i32
    %c0_i32_0 = arith.constant 0 : i32
    %c0_i32_1 = arith.constant 0 : i32
    return %c0_i32, %c0_i32_0 : i32, i32
  }
  func.func @transform_8(%arg0: i32, %arg1: i32) -> (i32, i32) {
    %c0_i32 = arith.constant 0 : i32
    %c0_i32_0 = arith.constant 0 : i32
    %c0_i32_1 = arith.constant 0 : i32
    return %c0_i32, %c0_i32_0 : i32, i32
  }
  func.func @transform_9(%arg0: i32, %arg1: i32) -> (i32, i32) {
    %c0_i32 = arith.constant 0 : i32
    %c0_i32_0 = arith.constant 0 : i32
    %c0_i32_1 = arith.constant 0 : i32
    return %c0_i32, %c0_i32_0 : i32, i32
  }
  func.func @transform_10(%arg0: i32, %arg1: i32) -> (i32, i32, i32) {
    %c0_i32 = arith.constant 0 : i32
    %c0_i32_0 = arith.constant 0 : i32
    return %arg0, %arg1, %c0_i32 : i32, i32, i32
  }
  func.func @transform_11(%arg0: i32, %arg1: i32) -> (i32, i32, i32) {
    %c0_i32 = arith.constant 0 : i32
    %c0_i32_0 = arith.constant 0 : i32
    return %arg0, %arg1, %c0_i32 : i32, i32, i32
  }
  func.func @transform_12(%arg0: i32, %arg1: i32) -> (i32, i32, i32) {
    %c0_i32 = arith.constant 0 : i32
    %c0_i32_0 = arith.constant 0 : i32
    return %arg0, %arg1, %c0_i32 : i32, i32, i32
  }
  func.func @transform_13(%arg0: i32, %arg1: i32) -> (i32, i32, i32) {
    %c0_i32 = arith.constant 0 : i32
    %c0_i32_0 = arith.constant 0 : i32
    return %arg0, %arg1, %c0_i32 : i32, i32, i32
  }
  func.func @transform_14(%arg0: i32, %arg1: i32) -> (i32, i32, i32) {
    %c0_i32 = arith.constant 0 : i32
    %c0_i32_0 = arith.constant 0 : i32
    return %arg0, %arg1, %c0_i32 : i32, i32, i32
  }
  func.func @transform_15(%arg0: i32, %arg1: i32) -> (i32, i32, i32) {
    %c0_i32 = arith.constant 0 : i32
    %c0_i32_0 = arith.constant 0 : i32
    return %arg0, %arg1, %c0_i32 : i32, i32, i32
  }
}

</mosaic_0001>

<llo_original>
// kernel: tpu_custom_call.1
$region0: #{tpu_custom_call.1}
  #allocation0 [shape = 'u32[]', space=smem, size = 0x4, offset = 0x4, fixed_abs, tag = 'smem constant byte address 0x4 - core index']
  #allocation1 [shape = 'u32[144,128]{1,0:T(1,128)}', space=vmem, size = 0x12000, scoped, tag = 'internal scratch']
  %s0 = inlined_call_operand.hbm [shape: f32[2,8,32], index: 0, kind: input, shape index: {}]
  %s1 = inlined_call_operand.hbm [shape: f32[2,8,32], index: 1, kind: input, shape index: {}]
  %s2 = inlined_call_operand.hbm [shape: f32[8,16], index: 2, kind: input, shape index: {}]
  %s3 = inlined_call_operand.hbm [shape: f32[8,16], index: 3, kind: input, shape index: {}]
  %s4 = inlined_call_operand.vmem [shape: f32[1,32], index: 4, kind: input, shape index: {}]
  %s5 = inlined_call_operand.vmem [shape: bf16[32,32], index: 5, kind: input, shape index: {}]
  %s6 = inlined_call_operand.vmem [shape: f32[1,32], index: 6, kind: input, shape index: {}]
  %s7 = inlined_call_operand.hbm [shape: bf16[32,112], index: 7, kind: input, shape index: {}]
  %s8 = inlined_call_operand.vmem [shape: f32[1,112], index: 8, kind: input, shape index: {}]
  %s9 = inlined_call_operand.vmem [shape: f32[4,16], index: 9, kind: input, shape index: {}]
  %s10 = inlined_call_operand.hbm [shape: bf16[2,8,32], index: 10, kind: output, shape index: {0}]
  %s11 = inlined_call_operand.hbm [shape: bf16[2,8,32], index: 11, kind: output, shape index: {1}]
  %s12 = inlined_call_operand.hbm [shape: bf16[2,8,32], index: 12, kind: output, shape index: {2}]
  %s13 = inlined_call_operand.hbm [shape: f32[2,8,32], index: 13, kind: output, shape index: {3}]
  %s14 = inlined_call_operand.hbm [shape: f32[2,8,32], index: 14, kind: output, shape index: {4}]
  %s15 = inlined_call_operand.hbm [shape: f32[2,8,32], index: 15, kind: output, shape index: {5}]
  %16 = xla_tuple %s10, %s11, %s12, %s13, %s14, %s15
  %s17 = sld [smem:[#allocation0]]
  $region133: #{tpu_custom_call.1} parent=0
    _
  %s19 = ssub.s32 1, %s17
  %s20 = scalar_select 0, %s19, %s17
  $region1: #{tpu_custom_call.1} parent=0
    #allocation2 [shape = 'u8[8192]{0}', space=vmem, size = 0x2000, scoped, tag = 'input window, operand 0']
    #allocation3 [shape = 's32[2]{0}', space=sflag, size = 0x8, scoped, tag = 'scoped memory for tpu_custom_call.1']
    #allocation4 [shape = 's32[2]{0}', space=sflag, size = 0x8, scoped, tag = 'scoped memory for tpu_custom_call.1']
    #allocation5 [shape = 'u8[8192]{0}', space=vmem, size = 0x2000, scoped, tag = 'input window, operand 1']
    #allocation6 [shape = 's32[2]{0}', space=sflag, size = 0x8, scoped, tag = 'scoped memory for tpu_custom_call.1']
    #allocation7 [shape = 'u8[4096]{0}', space=vmem, size = 0x1000, scoped, tag = 'input window, operand 2, single buffered']
    #allocation8 [shape = 'u8[4096]{0}', space=vmem, size = 0x1000, scoped, tag = 'input window, operand 3, single buffered']
    #allocation9 [shape = 's32[1]{0}', space=sflag, size = 0x4, scoped, tag = 'scoped memory for tpu_custom_call.1']
    #allocation10 [shape = 'u8[8192]{0}', space=vmem, size = 0x2000, scoped, tag = 'input window, operand 7, single buffered']
    #allocation11 [shape = 'u8[4096]{0}', space=vmem, size = 0x1000, scoped, tag = 'output window, operand 0']
    #allocation12 [shape = 'u8[4096]{0}', space=vmem, size = 0x1000, scoped, tag = 'output window, operand 1']
    #allocation13 [shape = 's32[2]{0}', space=sflag, size = 0x8, scoped, tag = 'scoped memory for tpu_custom_call.1']
    #allocation14 [shape = 'u8[4096]{0}', space=vmem, size = 0x1000, scoped, tag = 'output window, operand 2']
    #allocation15 [shape = 'u8[8192]{0}', space=vmem, size = 0x2000, scoped, tag = 'output window, operand 3']
    #allocation16 [shape = 's32[2]{0}', space=sflag, size = 0x8, scoped, tag = 'scoped memory for tpu_custom_call.1']
    #allocation17 [shape = 'u8[8192]{0}', space=vmem, size = 0x2000, scoped, tag = 'output window, operand 4']
    #allocation18 [shape = 'u8[8192]{0}', space=vmem, size = 0x2000, scoped, tag = 'output window, operand 5']
    #allocation19 [shape = 's32[2]{0}', space=sflag, size = 0x8, scoped, tag = 'scoped memory for tpu_custom_call.1']
    %21 = vsyncpa [#allocation3], 0
    %s22 = scalar_lea.sflag [#allocation3], 1
    %23 = vsyncpa %s22, 0
    %24 = vsyncpa [#allocation6], 0
    %s25 = scalar_lea.sflag [#allocation6], 1
    %26 = vsyncpa %s25, 0
    %27 = vsyncpa [#allocation9], 0
    %28 = vsyncpa [#allocation4], 0
    %s29 = scalar_lea.sflag [#allocation4], 1
    %30 = vsyncpa %s29, 0
    %31 = vsyncpa [#allocation13], 0
    %s32 = scalar_lea.sflag [#allocation13], 1
    %33 = vsyncpa %s32, 0
    %34 = vsyncpa [#allocation16], 0
    %s35 = scalar_lea.sflag [#allocation16], 1
    %36 = vsyncpa %s35, 0
    %37 = vsyncpa [#allocation19], 0
    %s38 = scalar_lea.sflag [#allocation19], 1
    %39 = vsyncpa %s38, 0
    loop: start=0, step=1, limit=4
    $region2: #{tpu_custom_call.1} parent=1 // loop_pre_header
      _
    $region3: #{tpu_custom_call.1} parent=1 // loop_header
      %s41 = sphi 0, %s45
      %p42 = scmp.ge.s32.totalorder %s41, 4
      %s48 = sphi 0, %s60
      %s49 = sphi 0, %s56
      %s50 = sphi 0, %s48
      %s51 = sphi 0, %s49
      %s52 = sphi 0, %s50
      %s53 = sphi 0, %s51
      %s65 = sphi 0, %s67
      %s68 = sphi 0, %s65
      %s69 = sphi 0, %s68
      %s85 = sphi 0, %s69
      %s93 = sphi 0, %s95
      %s96 = sphi 0, %s93
      %s97 = sphi 0, %s96
      %s113 = sphi 0, %s97
      %s119 = sphi 0, %s121
      %s122 = sphi 0, %s119
      %s123 = sphi 0, %s122
      %s139 = sphi 0, %s123
      %s145 = sphi 0, %s147
      %s148 = sphi 0, %s145
      %s149 = sphi 0, %s148
      %s165 = sphi 0, %s149
      %s169 = sphi 0, %s169
      %s171 = sphi 0, %s169
      %s172 = sphi 0, %s171
      %s186 = sphi 0, %s172
      %s190 = sphi 0, %s190
      %s192 = sphi 0, %s190
      %s193 = sphi 0, %s192
      %s207 = sphi 0, %s193
      %s211 = sphi 0, %s211
      %s213 = sphi 0, %s211
      %s214 = sphi 0, %s213
      %s228 = sphi 0, %s214
      %s232 = sphi 0, %s232
      %s234 = sphi 0, %s232
      %s235 = sphi 0, %s234
      %s249 = sphi 0, %s235
      %s253 = sphi 0, %s253
      %s255 = sphi 0, %s253
      %s256 = sphi 0, %s255
      %s270 = sphi 0, %s256
      %s274 = sphi 0, %s274
      %s276 = sphi 0, %s274
      %s277 = sphi 0, %s276
      %s291 = sphi 0, %s277
      %s299 = sphi 0, %s301
      %s302 = sphi 0, %s299
      %s303 = sphi 0, %s302
      %s319 = sphi 0, %s303
      %s327 = sphi 0, %s329
      %s330 = sphi 0, %s327
      %s331 = sphi 0, %s330
      %s347 = sphi 0, %s331
      %s355 = sphi 0, %s357
      %s358 = sphi 0, %s355
      %s359 = sphi 0, %s358
      %s375 = sphi 0, %s359
      %s383 = sphi 0, %s385
      %s386 = sphi 0, %s383
      %s387 = sphi 0, %s386
      %s403 = sphi 0, %s387
      %s411 = sphi 0, %s413
      %s414 = sphi 0, %s411
      %s415 = sphi 0, %s414
      %s431 = sphi 0, %s415
      %s439 = sphi 0, %s441
      %s442 = sphi 0, %s439
      %s443 = sphi 0, %s442
      %s459 = sphi 0, %s443
    $region4: #{tpu_custom_call.1} parent=1 // loop_header_branch
      %44 = sbr.rel (%p42) target = $region8
    $region5: #{tpu_custom_call.1} parent=1 // loop_body
      %s46 = ssub.s32 %s41, 1
      %s47 = ssub.s32 %s41, 2
      %s54 = sadd.s32 1, %s49
      %p55 = scmp.ge.s32.totalorder %s54, 1
      %s56 = scalar_select %p55, 0, %s54
      %s57 = sadd.s32 1, %s48
      %s58 = scalar_select %p55, %s57, %s48
      %p59 = scmp.ge.s32.totalorder %s58, 2
      %s60 = scalar_select %p59, 0, %s58
      %s61 = ssub.s32 %s48, %s60
      %s62 = ssub.s32 %s49, %s56
      %s63 = sor.u32 %s61, %s62
      %p64 = scmp.eq.s32.totalorder %s63, 0
      %s66 = sadd.s32 %s65, 1
      %s67 = scalar_select %p64, %s65, %s66
      %p70 = pneg %p64
      %p71 = scmp.eq.s32.totalorder %s41, 1
      %p72 = por %p70, %p71
      %p73 = scmp.ne.s32.totalorder %s65, %s68
      %p74 = scmp.eq.s32.totalorder %s41, 0
      %p75 = por %p73, %p74
      %p76 = scmp.ne.s32.totalorder %s65, %s68
      %p77 = scmp.eq.s32.totalorder %s46, 1
      %p78 = por %p76, %p77
      %p79 = scmp.ne.s32.totalorder %s68, %s69
      %p80 = scmp.eq.s32.totalorder %s46, 0
      %p81 = por %p79, %p80
      %p82 = scmp.ne.s32.totalorder %s68, %s69
      %p83 = scmp.eq.s32.totalorder %s47, 1
      %p84 = por %p82, %p83
      %p86 = scmp.ne.s32.totalorder %s69, %s85
      %p87 = scmp.eq.s32.totalorder %s47, 0
      %p88 = por %p86, %p87
      %s89 = ssub.s32 %s48, %s60
      %s90 = ssub.s32 %s49, %s56
      %s91 = sor.u32 %s89, %s90
      %p92 = scmp.eq.s32.totalorder %s91, 0
      %s94 = sadd.s32 %s93, 1
      %s95 = scalar_select %p92, %s93, %s94
      %p98 = pneg %p92
      %p99 = scmp.eq.s32.totalorder %s41, 1
      %p100 = por %p98, %p99
      %p101 = scmp.ne.s32.totalorder %s93, %s96
      %p102 = scmp.eq.s32.totalorder %s41, 0
      %p103 = por %p101, %p102
      %p104 = scmp.ne.s32.totalorder %s93, %s96
      %p105 = scmp.eq.s32.totalorder %s46, 1
      %p106 = por %p104, %p105
      %p107 = scmp.ne.s32.totalorder %s96, %s97
      %p108 = scmp.eq.s32.totalorder %s46, 0
      %p109 = por %p107, %p108
      %p110 = scmp.ne.s32.totalorder %s96, %s97
      %p111 = scmp.eq.s32.totalorder %s47, 1
      %p112 = por %p110, %p111
      %p114 = scmp.ne.s32.totalorder %s97, %s113
      %p115 = scmp.eq.s32.totalorder %s47, 0
      %p116 = por %p114, %p115
      %s117 = ssub.s32 %s49, %s56
      %p118 = scmp.eq.s32.totalorder %s117, 0
      %s120 = sadd.s32 %s119, 1
      %s121 = scalar_select %p118, %s119, %s120
      %p124 = pneg %p118
      %p125 = scmp.eq.s32.totalorder %s41, 1
      %p126 = por %p124, %p125
      %p127 = scmp.ne.s32.totalorder %s119, %s122
      %p128 = scmp.eq.s32.totalorder %s41, 0
      %p129 = por %p127, %p128
      %p130 = scmp.ne.s32.totalorder %s119, %s122
      %p131 = scmp.eq.s32.totalorder %s46, 1
      %p132 = por %p130, %p131
      %p133 = scmp.ne.s32.totalorder %s122, %s123
      %p134 = scmp.eq.s32.totalorder %s46, 0
      %p135 = por %p133, %p134
      %p136 = scmp.ne.s32.totalorder %s122, %s123
      %p137 = scmp.eq.s32.totalorder %s47, 1
      %p138 = por %p136, %p137
      %p140 = scmp.ne.s32.totalorder %s123, %s139
      %p141 = scmp.eq.s32.totalorder %s47, 0
      %p142 = por %p140, %p141
      %s143 = ssub.s32 %s49, %s56
      %p144 = scmp.eq.s32.totalorder %s143, 0
      %s146 = sadd.s32 %s145, 1
      %s147 = scalar_select %p144, %s145, %s146
      %p150 = pneg %p144
      %p151 = scmp.eq.s32.totalorder %s41, 1
      %p152 = por %p150, %p151
      %p153 = scmp.ne.s32.totalorder %s145, %s148
      %p154 = scmp.eq.s32.totalorder %s41, 0
      %p155 = por %p153, %p154
      %p156 = scmp.ne.s32.totalorder %s145, %s148
      %p157 = scmp.eq.s32.totalorder %s46, 1
      %p158 = por %p156, %p157
      %p159 = scmp.ne.s32.totalorder %s148, %s149
      %p160 = scmp.eq.s32.totalorder %s46, 0
      %p161 = por %p159, %p160
      %p162 = scmp.ne.s32.totalorder %s148, %s149
      %p163 = scmp.eq.s32.totalorder %s47, 1
      %p164 = por %p162, %p163
      %p166 = scmp.ne.s32.totalorder %s149, %s165
      %p167 = scmp.eq.s32.totalorder %s47, 0
      %p168 = por %p166, %p167
      %s170 = sadd.s32 %s169, 1
      %p173 = scmp.eq.s32.totalorder %s41, 1
      %p174 = scmp.ne.s32.totalorder %s169, %s171
      %p175 = scmp.eq.s32.totalorder %s41, 0
      %p176 = por %p174, %p175
      %p177 = scmp.ne.s32.totalorder %s169, %s171
      %p178 = scmp.eq.s32.totalorder %s46, 1
      %p179 = por %p177, %p178
      %p180 = scmp.ne.s32.totalorder %s171, %s172
      %p181 = scmp.eq.s32.totalorder %s46, 0
      %p182 = por %p180, %p181
      %p183 = scmp.ne.s32.totalorder %s171, %s172
      %p184 = scmp.eq.s32.totalorder %s47, 1
      %p185 = por %p183, %p184
      %p187 = scmp.ne.s32.totalorder %s172, %s186
      %p188 = scmp.eq.s32.totalorder %s47, 0
      %p189 = por %p187, %p188
      %s191 = sadd.s32 %s190, 1
      %p194 = scmp.eq.s32.totalorder %s41, 1
      %p195 = scmp.ne.s32.totalorder %s190, %s192
      %p196 = scmp.eq.s32.totalorder %s41, 0
      %p197 = por %p195, %p196
      %p198 = scmp.ne.s32.totalorder %s190, %s192
      %p199 = scmp.eq.s32.totalorder %s46, 1
      %p200 = por %p198, %p199
      %p201 = scmp.ne.s32.totalorder %s192, %s193
      %p202 = scmp.eq.s32.totalorder %s46, 0
      %p203 = por %p201, %p202
      %p204 = scmp.ne.s32.totalorder %s192, %s193
      %p205 = scmp.eq.s32.totalorder %s47, 1
      %p206 = por %p204, %p205
      %p208 = scmp.ne.s32.totalorder %s193, %s207
      %p209 = scmp.eq.s32.totalorder %s47, 0
      %p210 = por %p208, %p209
      %s212 = sadd.s32 %s211, 1
      %p215 = scmp.eq.s32.totalorder %s41, 1
      %p216 = scmp.ne.s32.totalorder %s211, %s213
      %p217 = scmp.eq.s32.totalorder %s41, 0
      %p218 = por %p216, %p217
      %p219 = scmp.ne.s32.totalorder %s211, %s213
      %p220 = scmp.eq.s32.totalorder %s46, 1
      %p221 = por %p219, %p220
      %p222 = scmp.ne.s32.totalorder %s213, %s214
      %p223 = scmp.eq.s32.totalorder %s46, 0
      %p224 = por %p222, %p223
      %p225 = scmp.ne.s32.totalorder %s213, %s214
      %p226 = scmp.eq.s32.totalorder %s47, 1
      %p227 = por %p225, %p226
      %p229 = scmp.ne.s32.totalorder %s214, %s228
      %p230 = scmp.eq.s32.totalorder %s47, 0
      %p231 = por %p229, %p230
      %s233 = sadd.s32 %s232, 1
      %p236 = scmp.eq.s32.totalorder %s41, 1
      %p237 = scmp.ne.s32.totalorder %s232, %s234
      %p238 = scmp.eq.s32.totalorder %s41, 0
      %p239 = por %p237, %p238
      %p240 = scmp.ne.s32.totalorder %s232, %s234
      %p241 = scmp.eq.s32.totalorder %s46, 1
      %p242 = por %p240, %p241
      %p243 = scmp.ne.s32.totalorder %s234, %s235
      %p244 = scmp.eq.s32.totalorder %s46, 0
      %p245 = por %p243, %p244
      %p246 = scmp.ne.s32.totalorder %s234, %s235
      %p247 = scmp.eq.s32.totalorder %s47, 1
      %p248 = por %p246, %p247
      %p250 = scmp.ne.s32.totalorder %s235, %s249
      %p251 = scmp.eq.s32.totalorder %s47, 0
      %p252 = por %p250, %p251
      %s254 = sadd.s32 %s253, 1
      %p257 = scmp.eq.s32.totalorder %s41, 1
      %p258 = scmp.ne.s32.totalorder %s253, %s255
      %p259 = scmp.eq.s32.totalorder %s41, 0
      %p260 = por %p258, %p259
      %p261 = scmp.ne.s32.totalorder %s253, %s255
      %p262 = scmp.eq.s32.totalorder %s46, 1
      %p263 = por %p261, %p262
      %p264 = scmp.ne.s32.totalorder %s255, %s256
      %p265 = scmp.eq.s32.totalorder %s46, 0
      %p266 = por %p264, %p265
      %p267 = scmp.ne.s32.totalorder %s255, %s256
      %p268 = scmp.eq.s32.totalorder %s47, 1
      %p269 = por %p267, %p268
      %p271 = scmp.ne.s32.totalorder %s256, %s270
      %p272 = scmp.eq.s32.totalorder %s47, 0
      %p273 = por %p271, %p272
      %s275 = sadd.s32 %s274, 1
      %p278 = scmp.eq.s32.totalorder %s41, 1
      %p279 = scmp.ne.s32.totalorder %s274, %s276
      %p280 = scmp.eq.s32.totalorder %s41, 0
      %p281 = por %p279, %p280
      %p282 = scmp.ne.s32.totalorder %s274, %s276
      %p283 = scmp.eq.s32.totalorder %s46, 1
      %p284 = por %p282, %p283
      %p285 = scmp.ne.s32.totalorder %s276, %s277
      %p286 = scmp.eq.s32.totalorder %s46, 0
      %p287 = por %p285, %p286
      %p288 = scmp.ne.s32.totalorder %s276, %s277
      %p289 = scmp.eq.s32.totalorder %s47, 1
      %p290 = por %p288, %p289
      %p292 = scmp.ne.s32.totalorder %s277, %s291
      %p293 = scmp.eq.s32.totalorder %s47, 0
      %p294 = por %p292, %p293
      %s295 = ssub.s32 %s48, %s60
      %s296 = ssub.s32 %s49, %s56
      %s297 = sor.u32 %s295, %s296
      %p298 = scmp.eq.s32.totalorder %s297, 0
      %s300 = sadd.s32 %s299, 1
      %s301 = scalar_select %p298, %s299, %s300
      %p304 = pneg %p298
      %p305 = scmp.eq.s32.totalorder %s41, 1
      %p306 = por %p304, %p305
      %p307 = scmp.ne.s32.totalorder %s299, %s302
      %p308 = scmp.eq.s32.totalorder %s41, 0
      %p309 = por %p307, %p308
      %p310 = scmp.ne.s32.totalorder %s299, %s302
      %p311 = scmp.eq.s32.totalorder %s46, 1
      %p312 = por %p310, %p311
      %p313 = scmp.ne.s32.totalorder %s302, %s303
      %p314 = scmp.eq.s32.totalorder %s46, 0
      %p315 = por %p313, %p314
      %p316 = scmp.ne.s32.totalorder %s302, %s303
      %p317 = scmp.eq.s32.totalorder %s47, 1
      %p318 = por %p316, %p317
      %p320 = scmp.ne.s32.totalorder %s303, %s319
      %p321 = scmp.eq.s32.totalorder %s47, 0
      %p322 = por %p320, %p321
      %s323 = ssub.s32 %s48, %s60
      %s324 = ssub.s32 %s49, %s56
      %s325 = sor.u32 %s323, %s324
      %p326 = scmp.eq.s32.totalorder %s325, 0
      %s328 = sadd.s32 %s327, 1
      %s329 = scalar_select %p326, %s327, %s328
      %p332 = pneg %p326
      %p333 = scmp.eq.s32.totalorder %s41, 1
      %p334 = por %p332, %p333
      %p335 = scmp.ne.s32.totalorder %s327, %s330
      %p336 = scmp.eq.s32.totalorder %s41, 0
      %p337 = por %p335, %p336
      %p338 = scmp.ne.s32.totalorder %s327, %s330
      %p339 = scmp.eq.s32.totalorder %s46, 1
      %p340 = por %p338, %p339
      %p341 = scmp.ne.s32.totalorder %s330, %s331
      %p342 = scmp.eq.s32.totalorder %s46, 0
      %p343 = por %p341, %p342
      %p344 = scmp.ne.s32.totalorder %s330, %s331
      %p345 = scmp.eq.s32.totalorder %s47, 1
      %p346 = por %p344, %p345
      %p348 = scmp.ne.s32.totalorder %s331, %s347
      %p349 = scmp.eq.s32.totalorder %s47, 0
      %p350 = por %p348, %p349
      %s351 = ssub.s32 %s48, %s60
      %s352 = ssub.s32 %s49, %s56
      %s353 = sor.u32 %s351, %s352
      %p354 = scmp.eq.s32.totalorder %s353, 0
      %s356 = sadd.s32 %s355, 1
      %s357 = scalar_select %p354, %s355, %s356
      %p360 = pneg %p354
      %p361 = scmp.eq.s32.totalorder %s41, 1
      %p362 = por %p360, %p361
      %p363 = scmp.ne.s32.totalorder %s355, %s358
      %p364 = scmp.eq.s32.totalorder %s41, 0
      %p365 = por %p363, %p364
      %p366 = scmp.ne.s32.totalorder %s355, %s358
      %p367 = scmp.eq.s32.totalorder %s46, 1
      %p368 = por %p366, %p367
      %p369 = scmp.ne.s32.totalorder %s358, %s359
      %p370 = scmp.eq.s32.totalorder %s46, 0
      %p371 = por %p369, %p370
      %p372 = scmp.ne.s32.totalorder %s358, %s359
      %p373 = scmp.eq.s32.totalorder %s47, 1
      %p374 = por %p372, %p373
      %p376 = scmp.ne.s32.totalorder %s359, %s375
      %p377 = scmp.eq.s32.totalorder %s47, 0
      %p378 = por %p376, %p377
      %s379 = ssub.s32 %s48, %s60
      %s380 = ssub.s32 %s49, %s56
      %s381 = sor.u32 %s379, %s380
      %p382 = scmp.eq.s32.totalorder %s381, 0
      %s384 = sadd.s32 %s383, 1
      %s385 = scalar_select %p382, %s383, %s384
      %p388 = pneg %p382
      %p389 = scmp.eq.s32.totalorder %s41, 1
      %p390 = por %p388, %p389
      %p391 = scmp.ne.s32.totalorder %s383, %s386
      %p392 = scmp.eq.s32.totalorder %s41, 0
      %p393 = por %p391, %p392
      %p394 = scmp.ne.s32.totalorder %s383, %s386
      %p395 = scmp.eq.s32.totalorder %s46, 1
      %p396 = por %p394, %p395
      %p397 = scmp.ne.s32.totalorder %s386, %s387
      %p398 = scmp.eq.s32.totalorder %s46, 0
      %p399 = por %p397, %p398
      %p400 = scmp.ne.s32.totalorder %s386, %s387
      %p401 = scmp.eq.s32.totalorder %s47, 1
      %p402 = por %p400, %p401
      %p404 = scmp.ne.s32.totalorder %s387, %s403
      %p405 = scmp.eq.s32.totalorder %s47, 0
      %p406 = por %p404, %p405
      %s407 = ssub.s32 %s48, %s60
      %s408 = ssub.s32 %s49, %s56
      %s409 = sor.u32 %s407, %s408
      %p410 = scmp.eq.s32.totalorder %s409, 0
      %s412 = sadd.s32 %s411, 1
      %s413 = scalar_select %p410, %s411, %s412
      %p416 = pneg %p410
      %p417 = scmp.eq.s32.totalorder %s41, 1
      %p418 = por %p416, %p417
      %p419 = scmp.ne.s32.totalorder %s411, %s414
      %p420 = scmp.eq.s32.totalorder %s41, 0
      %p421 = por %p419, %p420
      %p422 = scmp.ne.s32.totalorder %s411, %s414
      %p423 = scmp.eq.s32.totalorder %s46, 1
      %p424 = por %p422, %p423
      %p425 = scmp.ne.s32.totalorder %s414, %s415
      %p426 = scmp.eq.s32.totalorder %s46, 0
      %p427 = por %p425, %p426
      %p428 = scmp.ne.s32.totalorder %s414, %s415
      %p429 = scmp.eq.s32.totalorder %s47, 1
      %p430 = por %p428, %p429
      %p432 = scmp.ne.s32.totalorder %s415, %s431
      %p433 = scmp.eq.s32.totalorder %s47, 0
      %p434 = por %p432, %p433
      %s435 = ssub.s32 %s48, %s60
      %s436 = ssub.s32 %s49, %s56
      %s437 = sor.u32 %s435, %s436
      %p438 = scmp.eq.s32.totalorder %s437, 0
      %s440 = sadd.s32 %s439, 1
      %s441 = scalar_select %p438, %s439, %s440
      %p444 = pneg %p438
      %p445 = scmp.eq.s32.totalorder %s41, 1
      %p446 = por %p444, %p445
      %p447 = scmp.ne.s32.totalorder %s439, %s442
      %p448 = scmp.eq.s32.totalorder %s41, 0
      %p449 = por %p447, %p448
      %p450 = scmp.ne.s32.totalorder %s439, %s442
      %p451 = scmp.eq.s32.totalorder %s46, 1
      %p452 = por %p450, %p451
      %p453 = scmp.ne.s32.totalorder %s442, %s443
      %p454 = scmp.eq.s32.totalorder %s46, 0
      %p455 = por %p453, %p454
      %p456 = scmp.ne.s32.totalorder %s442, %s443
      %p457 = scmp.eq.s32.totalorder %s47, 1
      %p458 = por %p456, %p457
      %p460 = scmp.ne.s32.totalorder %s443, %s459
      %p461 = scmp.eq.s32.totalorder %s47, 0
      %p462 = por %p460, %p461
      %p463 = scmp.le.s32.totalorder 1, %s41
      %p464 = scmp.lt.s32.totalorder %s41, 3
      %p465 = pnand %p463, %p464
      %p466 = pneg %p465
      // Predicated region
      $region9: #{tpu_custom_call.1} parent=5 // pred_check
        _
      $region10: #{tpu_custom_call.1} parent=5 // pred_check_branch
        %468 = sbr.rel (%p465) target = $region12
      $region11: #{tpu_custom_call.1} parent=5 // pred_region
        %s469 = ssub.s32 %s41, 1
        // Predicated region
        $region13: #{tpu_custom_call.1} parent=11 // pred_check
          %p470 = pneg %p135
        $region14: #{tpu_custom_call.1} parent=11 // pred_check_branch
          %472 = sbr.rel (%p470) target = $region16
        $region15: #{tpu_custom_call.1} parent=11 // pred_region
          %s474 = ssub.s32 128, 128
          %475 = vsyncadd [#allocation6], %s474
          %s476 = smul.addr %s51, 128
          %s477 = scalar_lea.hbm %s2, %s476
          %s479 = sshll.u32 [#allocation7], 4
          %s480 = int_to_ptr.vmem [resolvable:$true] %s479
          %482 = dma.hbm_to_vmem [thread:$0]  %s477, 128, %s480, [#allocation6]
        $region16: #{tpu_custom_call.1} parent=11 // pred_fallthru
          _
        // Predicated region
        $region17: #{tpu_custom_call.1} parent=11 // pred_check
          %p483 = pneg %p161
        $region18: #{tpu_custom_call.1} parent=11 // pred_check_branch
          %485 = sbr.rel (%p483) target = $region20
        $region19: #{tpu_custom_call.1} parent=11 // pred_region
          %s487 = ssub.s32 128, 128
          %488 = vsyncadd [#allocation9], %s487
          %s489 = smul.addr %s51, 128
          %s490 = scalar_lea.hbm %s3, %s489
          %s492 = sshll.u32 [#allocation8], 4
          %s493 = int_to_ptr.vmem [resolvable:$true] %s492
          %495 = dma.hbm_to_vmem [thread:$0]  %s490, 128, %s493, [#allocation9]
        $region20: #{tpu_custom_call.1} parent=11 // pred_fallthru
          _
        // Predicated region
        $region21: #{tpu_custom_call.1} parent=11 // pred_check
          %p496 = pneg %p182
        $region22: #{tpu_custom_call.1} parent=11 // pred_check_branch
          %498 = sbr.rel (%p496) target = $region24
        $region23: #{tpu_custom_call.1} parent=11 // pred_region
          _
        $region24: #{tpu_custom_call.1} parent=11 // pred_fallthru
          _
        // Predicated region
        $region25: #{tpu_custom_call.1} parent=11 // pred_check
          %p499 = pneg %p203
        $region26: #{tpu_custom_call.1} parent=11 // pred_check_branch
          %501 = sbr.rel (%p499) target = $region28
        $region27: #{tpu_custom_call.1} parent=11 // pred_region
          _
        $region28: #{tpu_custom_call.1} parent=11 // pred_fallthru
          _
        // Predicated region
        $region29: #{tpu_custom_call.1} parent=11 // pred_check
          %p502 = pneg %p224
        $region30: #{tpu_custom_call.1} parent=11 // pred_check_branch
          %504 = sbr.rel (%p502) target = $region32
        $region31: #{tpu_custom_call.1} parent=11 // pred_region
          _
        $region32: #{tpu_custom_call.1} parent=11 // pred_fallthru
          _
        // Predicated region
        $region33: #{tpu_custom_call.1} parent=11 // pred_check
          %p505 = pneg %p245
        $region34: #{tpu_custom_call.1} parent=11 // pred_check_branch
          %507 = sbr.rel (%p505) target = $region36
        $region35: #{tpu_custom_call.1} parent=11 // pred_region
          %s509 = ssub.s32 256, 256
          %510 = vsyncadd [#allocation9], %s509
          %s511 = sshll.u32 [#allocation10], 4
          %s512 = int_to_ptr.vmem [resolvable:$true] %s511
          %517 = dma.hbm_to_vmem [thread:$0]  %s7, 256, %s512, [#allocation9], 64, 64, 4
        $region36: #{tpu_custom_call.1} parent=11 // pred_fallthru
          _
        // Predicated region
        $region37: #{tpu_custom_call.1} parent=11 // pred_check
          %p518 = pneg %p266
        $region38: #{tpu_custom_call.1} parent=11 // pred_check_branch
          %520 = sbr.rel (%p518) target = $region40
        $region39: #{tpu_custom_call.1} parent=11 // pred_region
          _
        $region40: #{tpu_custom_call.1} parent=11 // pred_fallthru
          _
        // Predicated region
        $region41: #{tpu_custom_call.1} parent=11 // pred_check
          %p521 = pneg %p287
        $region42: #{tpu_custom_call.1} parent=11 // pred_check_branch
          %523 = sbr.rel (%p521) target = $region44
        $region43: #{tpu_custom_call.1} parent=11 // pred_region
          _
        $region44: #{tpu_custom_call.1} parent=11 // pred_fallthru
          _
      $region12: #{tpu_custom_call.1} parent=5 // pred_fallthru
        _
      %p524 = scmp.lt.s32.totalorder %s41, 2
      // Predicated region
      $region45: #{tpu_custom_call.1} parent=5 // pred_check
        %p525 = pneg %p524
      $region46: #{tpu_custom_call.1} parent=5 // pred_check_branch
        %527 = sbr.rel (%p525) target = $region48
      $region47: #{tpu_custom_call.1} parent=5 // pred_region
        // Predicated region
        $region49: #{tpu_custom_call.1} parent=47 // pred_check
          %p528 = pneg %p75
        $region50: #{tpu_custom_call.1} parent=47 // pred_check_branch
          %530 = sbr.rel (%p528) target = $region52
        $region51: #{tpu_custom_call.1} parent=47 // pred_region
          %s531 = sand.u32 %s65, 1
          %s532 = scalar_lea.sflag [#allocation3], %s531
          %s533 = sand.u32 %s65, 1
          %s534 = smul.addr %s533, 8
          %s535 = scalar_lea.vmem [#allocation2], %s534
          %s537 = ssub.s32 128, 128
          %538 = vsyncadd %s532, %s537
          %s539 = sadd.s32 %s49, %s48
          %s540 = smul.addr %s539, 128
          %s541 = scalar_lea.hbm %s0, %s540
          %s543 = sshll.u32 %s535, 4
          %s544 = int_to_ptr.vmem [resolvable:$true] %s543
          %546 = dma.hbm_to_vmem [thread:$0]  %s541, 128, %s544, %s532
        $region52: #{tpu_custom_call.1} parent=47 // pred_fallthru
          _
        // Predicated region
        $region53: #{tpu_custom_call.1} parent=47 // pred_check
          %p547 = pneg %p103
        $region54: #{tpu_custom_call.1} parent=47 // pred_check_branch
          %549 = sbr.rel (%p547) target = $region56
        $region55: #{tpu_custom_call.1} parent=47 // pred_region
          %s550 = sand.u32 %s41, 1
          %s551 = scalar_lea.sflag [#allocation6], %s550
          %s552 = sand.u32 %s93, 1
          %s553 = smul.addr %s552, 8
          %s554 = scalar_lea.vmem [#allocation5], %s553
          %s556 = ssub.s32 128, 128
          %557 = vsyncadd %s551, %s556
          %s558 = sadd.s32 %s49, %s48
          %s559 = smul.addr %s558, 128
          %s560 = scalar_lea.hbm %s1, %s559
          %s562 = sshll.u32 %s554, 4
          %s563 = int_to_ptr.vmem [resolvable:$true] %s562
          %565 = dma.hbm_to_vmem [thread:$0]  %s560, 128, %s563, %s551
        $region56: #{tpu_custom_call.1} parent=47 // pred_fallthru
          _
      $region48: #{tpu_custom_call.1} parent=5 // pred_fallthru
        _
      %p566 = scmp.le.s32.totalorder 1, %s41
      %p567 = scmp.lt.s32.totalorder %s41, 3
      %p568 = pnand %p566, %p567
      %p569 = pneg %p568
      // Predicated region
      $region57: #{tpu_custom_call.1} parent=5 // pred_check
        _
      $region58: #{tpu_custom_call.1} parent=5 // pred_check_branch
        %571 = sbr.rel (%p568) target = $region60
      $region59: #{tpu_custom_call.1} parent=5 // pred_region
        %s572 = ssub.s32 %s41, 1
        %s573 = sand.u32 %s68, 1
        %s574 = scalar_lea.sflag [#allocation3], %s573
        %s575 = sand.u32 %s68, 1
        %s576 = smul.addr %s575, 8
        %s577 = scalar_lea.vmem [#allocation2], %s576
        // Predicated region
        $region61: #{tpu_custom_call.1} parent=59 // pred_check
          %p578 = pneg %p81
        $region62: #{tpu_custom_call.1} parent=59 // pred_check_branch
          %580 = sbr.rel (%p578) target = $region64
        $region63: #{tpu_custom_call.1} parent=59 // pred_region
          %581 = dma.done %s574, 128
        $region64: #{tpu_custom_call.1} parent=59 // pred_fallthru
          _
        %s582 = sand.u32 %s46, 1
        %s583 = scalar_lea.sflag [#allocation6], %s582
        %s584 = sand.u32 %s96, 1
        %s585 = smul.addr %s584, 8
        %s586 = scalar_lea.vmem [#allocation5], %s585
        // Predicated region
        $region65: #{tpu_custom_call.1} parent=59 // pred_check
          %p587 = pneg %p109
        $region66: #{tpu_custom_call.1} parent=59 // pred_check_branch
          %589 = sbr.rel (%p587) target = $region68
        $region67: #{tpu_custom_call.1} parent=59 // pred_region
          %590 = dma.done %s583, 128
        $region68: #{tpu_custom_call.1} parent=59 // pred_fallthru
          _
        // Predicated region
        $region69: #{tpu_custom_call.1} parent=59 // pred_check
          %p591 = pneg %p135
        $region70: #{tpu_custom_call.1} parent=59 // pred_check_branch
          %593 = sbr.rel (%p591) target = $region72
        $region71: #{tpu_custom_call.1} parent=59 // pred_region
          %594 = dma.done [#allocation6], 128
        $region72: #{tpu_custom_call.1} parent=59 // pred_fallthru
          _
        // Predicated region
        $region73: #{tpu_custom_call.1} parent=59 // pred_check
          %p595 = pneg %p161
        $region74: #{tpu_custom_call.1} parent=59 // pred_check_branch
          %597 = sbr.rel (%p595) target = $region76
        $region75: #{tpu_custom_call.1} parent=59 // pred_region
          %598 = dma.done [#allocation9], 128
        $region76: #{tpu_custom_call.1} parent=59 // pred_fallthru
          _
        // Predicated region
        $region77: #{tpu_custom_call.1} parent=59 // pred_check
          %p599 = pneg %p245
        $region78: #{tpu_custom_call.1} parent=59 // pred_check_branch
          %601 = sbr.rel (%p599) target = $region80
        $region79: #{tpu_custom_call.1} parent=59 // pred_region
          %602 = dma.done [#allocation9], 256
        $region80: #{tpu_custom_call.1} parent=59 // pred_fallthru
          _
        %s603 = sand.u32 %s68, 1
        %s604 = scalar_lea.sflag [#allocation3], %s603
        %s605 = sand.u32 %s68, 1
        %s606 = smul.addr %s605, 8
        %s607 = scalar_lea.vmem [#allocation2], %s606
        %p608 = pneg %p81
        %p609 = pneg %p78
        %s610 = sand.u32 %s46, 1
        %s611 = scalar_lea.sflag [#allocation6], %s610
        %s612 = sand.u32 %s96, 1
        %s613 = smul.addr %s612, 8
        %s614 = scalar_lea.vmem [#allocation5], %s613
        %p615 = pneg %p109
        %p616 = pneg %p106
        %p617 = pneg %p135
        %p618 = pneg %p132
        %p619 = pneg %p161
        %p620 = pneg %p158
        %p621 = pneg %p182
        %p622 = pneg %p179
        %p623 = pneg %p203
        %p624 = pneg %p200
        %p625 = pneg %p224
        %p626 = pneg %p221
        %p627 = pneg %p245
        %p628 = pneg %p242
        %p629 = pneg %p266
        %p630 = pneg %p263
        %p631 = pneg %p287
        %p632 = pneg %p284
        %p633 = pneg %p315
        %p634 = pneg %p312
        %s635 = sand.u32 %s302, 1
        %s636 = scalar_lea.sflag [#allocation4], %s635
        %s637 = sand.u32 %s302, 1
        %s638 = smul.addr %s637, 4
        %s639 = scalar_lea.vmem [#allocation11], %s638
        %p640 = pneg %p343
        %p641 = pneg %p340
        %s642 = sand.u32 %s46, 1
        %s643 = scalar_lea.sflag [#allocation13], %s642
        %s644 = sand.u32 %s330, 1
        %s645 = smul.addr %s644, 4
        %s646 = scalar_lea.vmem [#allocation12], %s645
        %p647 = pneg %p371
        %p648 = pneg %p368
        %s649 = sand.u32 %s46, 1
        %s650 = scalar_lea.sflag [#allocation13], %s649
        %s651 = sand.u32 %s358, 1
        %s652 = smul.addr %s651, 4
        %s653 = scalar_lea.vmem [#allocation14], %s652
        %p654 = pneg %p399
        %p655 = pneg %p396
        %s656 = sand.u32 %s46, 1
        %s657 = scalar_lea.sflag [#allocation16], %s656
        %s658 = sand.u32 %s386, 1
        %s659 = smul.addr %s658, 8
        %s660 = scalar_lea.vmem [#allocation15], %s659
        %p661 = pneg %p427
        %p662 = pneg %p424
        %s663 = sand.u32 %s46, 1
        %s664 = scalar_lea.sflag [#allocation16], %s663
        %s665 = sand.u32 %s414, 1
        %s666 = smul.addr %s665, 8
        %s667 = scalar_lea.vmem [#allocation17], %s666
        %p668 = pneg %p455
        %p669 = pneg %p452
        %s670 = sand.u32 %s442, 1
        %s671 = scalar_lea.sflag [#allocation19], %s670
        %s672 = sand.u32 %s442, 1
        %s673 = smul.addr %s672, 8
        %s674 = scalar_lea.vmem [#allocation18], %s673
        %v676 = vld [vmem:[%s577] sm:$0xff]
        %v677 = vmul.f32 %v676, %v676
        %vm678 = vcmask 261120
        %v679 = vsel %vm678, %v677, 0.0
        %680 = vadd.xlane.f32.xlu0 %v679
        %v681 = vpop.xlane.xlu0 %680
        %v682 = vrcp.pop 32.0
        %v683 = vmul.f32 %v681, %v682
        %v684 = vadd.f32 %v683, 1e-05
        %v685 = vrsqrt.pop %v684
        %v686 = vmul.f32 %v676, %v685
        %v687 = vld [vmem:[%s4] sm:$0x1]
        %v689 = vlaneseq
        %v690 = vshrl.u32 %v689, 7
        %v691 = vsub.s32 0, %v690
        %v692 = vrot.slane %v687, %v691
        %v694 = vmul.f32 %v686, %v692
        %v695 = vpack.c.bf16 %v694, %v694
        %v696 = vld [vmem:[%s5] sm:$0xf]
        %v697 = vld [vmem:[%s5 + $0x4] sm:$0xf]
        %v698 = vld [vmem:[%s5 + $0x8] sm:$0xf]
        %v699 = vld [vmem:[%s5 + $0xc] sm:$0xf]
        %v700 = vld [vmem:[%s6] sm:$0x1]
        %v702 = vlaneseq
        %v703 = vshrl.u32 %v702, 7
        %v704 = vsub.s32 0, %v703
        %v705 = vrot.slane %v700, %v704
        %v711 = vunpack.c.l.b16 %v696
        %v712 = vunpack.c.l.b16 %v697
        %v713 = vunpack.c.l.b16 %v698
        %v714 = vunpack.c.l.b16 %v699
        %v715 = vpack.c.b16 %v712, %v711
        %v716 = vpack.c.b16 %v714, %v713
        %v720 = vsel %vm678, %v695, 0
        %722 = vmatprep.subr.bf16.mxu0 0
        %723 = vmatpush1.bf16.msra.mxu0 %v715
        %724 = vmatprep.subr.bf16.mxu0 0
        %725 = vmatpush1.bf16.msra.mxu0 %v716
        %726 = vmatprep.subr.bf16.mxu0 0
        %727 = vmatpush1.bf16.msra.mxu0 0
        %728 = vmatprep.subr.bf16.mxu0 0
        %729 = vmatpush1.bf16.msra.mxu0 0
        %730 = vmatprep.subr.bf16.mxu0 0
        %731 = vmatpush1.bf16.msra.mxu0 0
        %732 = vmatprep.subr.bf16.mxu0 0
        %733 = vmatpush1.bf16.msra.mxu0 0
        %734 = vmatprep.subr.bf16.mxu0 0
        %735 = vmatpush1.bf16.msra.mxu0 0
        %736 = vmatprep.subr.bf16.mxu0 0
        %737 = vmatpush1.bf16.msra.mxu0 0
        %738 = vmatprep.subr.bf16.mxu0 0
        %739 = vmatpush1.bf16.msra.mxu0 0
        %740 = vmatprep.subr.bf16.mxu0 0
        %741 = vmatpush1.bf16.msra.mxu0 0
        %742 = vmatprep.subr.bf16.mxu0 0
        %743 = vmatpush1.bf16.msra.mxu0 0
        %744 = vmatprep.subr.bf16.mxu0 0
        %745 = vmatpush1.bf16.msra.mxu0 0
        %746 = vmatprep.subr.bf16.mxu0 0
        %747 = vmatpush1.bf16.msra.mxu0 0
        %748 = vmatprep.subr.bf16.mxu0 0
        %749 = vmatpush1.bf16.msra.mxu0 0
        %750 = vmatprep.subr.bf16.mxu0 0
        %751 = vmatpush1.bf16.msra.mxu0 0
        %752 = vmatprep.subr.bf16.mxu0 0
        %753 = vmatpush1.bf16.msra.mxu0 0
        %754 = vmatprep.mubr.bf16.mxu0 0
        %755 = vmatmul.mubr.bf16.gmra.mrb[0].mxu0 %v720
        %v756 = vpop.f32.mrb[0].mxu0
        %v757 = vadd.f32 %v705, %v756
        %v758 = vpop.f32.mrb[0].mxu0
        %v759 = vpop.f32.mrb[0].mxu0
        %v760 = vpop.f32.mrb[0].mxu0
        %761 = vdwg.mxu0
        %v762 = vxor.u32 %v757, 2147483648
        %v763 = vmul.f32 %v762, 1.442695
        %v764 = vpow.pop %v763
        %v765 = vadd.f32 %v764, 1.0
        %v766 = vrcp.pop %v765
        %v767 = vmul.f32 1.0, %v766
        %v768 = vmul.f32 %v757, %v767
        %v769 = vld [vmem:[%s586] sm:$0xff]
        %v770 = vxor.u32 %v769, 2147483648
        %v771 = vmul.f32 %v770, 1.442695
        %v772 = vpow.pop %v771
        %v773 = vadd.f32 %v772, 1.0
        %v774 = vrcp.pop %v773
        %v775 = vmul.f32 1.0, %v774
        %v776 = vmul.f32 %v769, %v775
        %v777 = vpack.c.bf16 %v776, %v776
        %v778 = vld [vmem:[#allocation10] sm:$0xf]
        %v779 = vld [vmem:[#allocation10 + $0x4] sm:$0xf]
        %v780 = vld [vmem:[#allocation10 + $0x8] sm:$0xf]
        %v781 = vld [vmem:[#allocation10 + $0xc] sm:$0xf]
        %v782 = vld [vmem:[%s8] sm:$0x1]
        %v784 = vlaneseq
        %v785 = vshrl.u32 %v784, 7
        %v786 = vsub.s32 0, %v785
        %v787 = vrot.slane %v782, %v786
        %v793 = vunpack.c.l.b16 %v778
        %v794 = vunpack.c.l.b16 %v779
        %v795 = vunpack.c.l.b16 %v780
        %v796 = vunpack.c.l.b16 %v781
        %v797 = vpack.c.b16 %v794, %v793
        %v798 = vpack.c.b16 %v796, %v795
        %v802 = vsel %vm678, %v777, 0
        %804 = vmatprep.subr.bf16.mxu0 0
        %805 = vmatpush1.bf16.msra.mxu0 %v797
        %806 = vmatprep.subr.bf16.mxu0 0
        %807 = vmatpush1.bf16.msra.mxu0 %v798
        %808 = vmatprep.subr.bf16.mxu0 0
        %809 = vmatpush1.bf16.msra.mxu0 0
        %810 = vmatprep.subr.bf16.mxu0 0
        %811 = vmatpush1.bf16.msra.mxu0 0
        %812 = vmatprep.subr.bf16.mxu0 0
        %813 = vmatpush1.bf16.msra.mxu0 0
        %814 = vmatprep.subr.bf16.mxu0 0
        %815 = vmatpush1.bf16.msra.mxu0 0
        %816 = vmatprep.subr.bf16.mxu0 0
        %817 = vmatpush1.bf16.msra.mxu0 0
        %818 = vmatprep.subr.bf16.mxu0 0
        %819 = vmatpush1.bf16.msra.mxu0 0
        %820 = vmatprep.subr.bf16.mxu0 0
        %821 = vmatpush1.bf16.msra.mxu0 0
        %822 = vmatprep.subr.bf16.mxu0 0
        %823 = vmatpush1.bf16.msra.mxu0 0
        %824 = vmatprep.subr.bf16.mxu0 0
        %825 = vmatpush1.bf16.msra.mxu0 0
        %826 = vmatprep.subr.bf16.mxu0 0
        %827 = vmatpush1.bf16.msra.mxu0 0
        %828 = vmatprep.subr.bf16.mxu0 0
        %829 = vmatpush1.bf16.msra.mxu0 0
        %830 = vmatprep.subr.bf16.mxu0 0
        %831 = vmatpush1.bf16.msra.mxu0 0
        %832 = vmatprep.subr.bf16.mxu0 0
        %833 = vmatpush1.bf16.msra.mxu0 0
        %834 = vmatprep.subr.bf16.mxu0 0
        %835 = vmatpush1.bf16.msra.mxu0 0
        %836 = vmatprep.mubr.bf16.mxu0 0
        %837 = vmatmul.mubr.bf16.gmra.mrb[0].mxu0 %v802
        %v838 = vpop.f32.mrb[0].mxu0
        %v839 = vadd.f32 %v787, %v838
        %v840 = vpop.f32.mrb[0].mxu0
        %v841 = vpop.f32.mrb[0].mxu0
        %v842 = vpop.f32.mrb[0].mxu0
        %843 = vdwg.mxu0
        %v844 = vxor.u32 %v839, 2147483648
        %v845 = vmul.f32 %v844, 1.442695
        %v846 = vpow.pop %v845
        %v847 = vadd.f32 %v846, 1.0
        %v848 = vrcp.pop %v847
        %v849 = vmul.f32 1.0, %v848
        %v850 = vmul.f32 %v839, %v849
        %v851 = vld [vmem:[%s9] sm:$0xf]
        %v852 = vlaneseq
        %v853 = vshrl.u32 %v852, 7
        %v854 = vsub.s32 0, %v853
        %v855 = vrot.slane %v851, %v854
        %857 = vrot.lane.b32.xlu0 %v855, 32
        %v858 = vpop.permute.xlu0 %857
        %v860 = vmul.f32 %v850, %v858
        %v861 = vlaneseq
        %v862 = vshrl.u32 %v861, 7
        %v863 = vsub.s32 1, %v862
        %v864 = vrot.slane %v851, %v863
        %866 = vrot.lane.b32.xlu0 %v864, 32
        %v867 = vpop.permute.xlu0 %866
        %v869 = vadd.f32 %v860, %v867
        %v870 = vmul.f32 %v869, 0.25
        %v871 = vlaneseq
        %v872 = vshrl.u32 %v871, 7
        %v873 = vsub.s32 2, %v872
        %v874 = vrot.slane %v851, %v873
        %876 = vrot.lane.b32.xlu0 %v874, 32
        %v877 = vpop.permute.xlu0 %876
        %v879 = vmul.f32 %v850, %v877
        %v880 = vlaneseq
        %v881 = vshrl.u32 %v880, 7
        %v882 = vsub.s32 3, %v881
        %v883 = vrot.slane %v851, %v882
        %885 = vrot.lane.b32.xlu0 %v883, 32
        %v886 = vpop.permute.xlu0 %885
        %v888 = vadd.f32 %v879, %v886
        %v889 = vld [vmem:[#allocation7] sm:$0xff]
        %891 = vrot.lane.b32.xlu0 %v870, 96
        %v892 = vpop.permute.xlu0 %891
        %895 = vrot.lane.b32.xlu0 %v889, 16
        %v896 = vpop.permute.xlu0 %895
        %vm898 = vcmask 130048
        %v899 = vsel %vm898, %v892, %v896
        %v900 = vld [vmem:[#allocation8] sm:$0xff]
        %902 = vrot.lane.b32.xlu0 %v888, 96
        %v903 = vpop.permute.xlu0 %902
        %906 = vrot.lane.b32.xlu0 %v900, 16
        %v907 = vpop.permute.xlu0 %906
        %v909 = vsel %vm898, %v903, %v907
        %v910 = vpack.c.bf16 %v768, %v768
        %vm911 = vcmask 257024
        %912 = vst.msk [vmem:[%s639] sm:$0xf] %vm911, %v910
        %v913 = vpack.c.bf16 %v899, %v899
        %914 = vst.msk [vmem:[%s646] sm:$0xf] %vm911, %v913
        %v915 = vpack.c.bf16 %v909, %v909
        %916 = vst.msk [vmem:[%s653] sm:$0xf] %vm911, %v915
        %917 = vst.msk [vmem:[%s660] sm:$0xff] %vm678, %v849
        %919 = vrot.lane.b32.xlu0 %v850, 80
        %v920 = vpop.permute.xlu0 %919
        %922 = vst.msk [vmem:[%s667] sm:$0xff] %vm678, %v920
        %924 = vrot.lane.b32.xlu0 %v839, 48
        %v925 = vpop.permute.xlu0 %924
        %927 = vst.msk [vmem:[%s674] sm:$0xff] %vm678, %v925
        %s928 = sand.u32 %s302, 1
        %s929 = scalar_lea.sflag [#allocation4], %s928
        %s930 = sand.u32 %s302, 1
        %s931 = smul.addr %s930, 4
        %s932 = scalar_lea.vmem [#allocation11], %s931
        %s933 = sand.u32 %s46, 1
        %s934 = scalar_lea.sflag [#allocation13], %s933
        %s935 = sand.u32 %s330, 1
        %s936 = smul.addr %s935, 4
        %s937 = scalar_lea.vmem [#allocation12], %s936
        %s938 = sand.u32 %s46, 1
        %s939 = scalar_lea.sflag [#allocation13], %s938
        %s940 = sand.u32 %s358, 1
        %s941 = smul.addr %s940, 4
        %s942 = scalar_lea.vmem [#allocation14], %s941
        %s943 = sand.u32 %s46, 1
        %s944 = scalar_lea.sflag [#allocation16], %s943
        %s945 = sand.u32 %s386, 1
        %s946 = smul.addr %s945, 8
        %s947 = scalar_lea.vmem [#allocation15], %s946
        %s948 = sand.u32 %s46, 1
        %s949 = scalar_lea.sflag [#allocation16], %s948
        %s950 = sand.u32 %s414, 1
        %s951 = smul.addr %s950, 8
        %s952 = scalar_lea.vmem [#allocation17], %s951
        %s953 = sand.u32 %s442, 1
        %s954 = scalar_lea.sflag [#allocation19], %s953
        %s955 = sand.u32 %s442, 1
        %s956 = smul.addr %s955, 8
        %s957 = scalar_lea.vmem [#allocation18], %s956
        // Predicated region
        $region81: #{tpu_custom_call.1} parent=59 // pred_check
          %p958 = pneg %p312
        $region82: #{tpu_custom_call.1} parent=59 // pred_check_branch
          %960 = sbr.rel (%p958) target = $region84
        $region83: #{tpu_custom_call.1} parent=59 // pred_region
          %s962 = ssub.s32 64, 64
          %963 = vsyncadd %s929, %s962
          %s964 = sadd.s32 %s51, %s50
          %s965 = smul.addr %s964, 64
          %s966 = scalar_lea.hbm %s10, %s965
          %s968 = sshll.u32 %s932, 4
          %s969 = int_to_ptr.vmem [resolvable:$true] %s968
          %971 = dma.vmem_to_hbm [thread:$0]  %s969, 64, %s966, %s929
        $region84: #{tpu_custom_call.1} parent=59 // pred_fallthru
          _
        // Predicated region
        $region85: #{tpu_custom_call.1} parent=59 // pred_check
          %p972 = pneg %p340
        $region86: #{tpu_custom_call.1} parent=59 // pred_check_branch
          %974 = sbr.rel (%p972) target = $region88
        $region87: #{tpu_custom_call.1} parent=59 // pred_region
          %s976 = ssub.s32 64, 64
          %977 = vsyncadd %s934, %s976
          %s978 = sadd.s32 %s51, %s50
          %s979 = smul.addr %s978, 64
          %s980 = scalar_lea.hbm %s11, %s979
          %s982 = sshll.u32 %s937, 4
          %s983 = int_to_ptr.vmem [resolvable:$true] %s982
          %985 = dma.vmem_to_hbm [thread:$0]  %s983, 64, %s980, %s934
        $region88: #{tpu_custom_call.1} parent=59 // pred_fallthru
          _
        // Predicated region
        $region89: #{tpu_custom_call.1} parent=59 // pred_check
          %p986 = pneg %p368
        $region90: #{tpu_custom_call.1} parent=59 // pred_check_branch
          %988 = sbr.rel (%p986) target = $region92
        $region91: #{tpu_custom_call.1} parent=59 // pred_region
          %s990 = ssub.s32 64, 64
          %991 = vsyncadd %s939, %s990
          %s992 = sadd.s32 %s51, %s50
          %s993 = smul.addr %s992, 64
          %s994 = scalar_lea.hbm %s12, %s993
          %s996 = sshll.u32 %s942, 4
          %s997 = int_to_ptr.vmem [resolvable:$true] %s996
          %999 = dma.vmem_to_hbm [thread:$0]  %s997, 64, %s994, %s939
        $region92: #{tpu_custom_call.1} parent=59 // pred_fallthru
          _
        // Predicated region
        $region93: #{tpu_custom_call.1} parent=59 // pred_check
          %p1000 = pneg %p396
        $region94: #{tpu_custom_call.1} parent=59 // pred_check_branch
          %1002 = sbr.rel (%p1000) target = $region96
        $region95: #{tpu_custom_call.1} parent=59 // pred_region
          %s1004 = ssub.s32 128, 128
          %1005 = vsyncadd %s944, %s1004
          %s1006 = sadd.s32 %s51, %s50
          %s1007 = smul.addr %s1006, 128
          %s1008 = scalar_lea.hbm %s13, %s1007
          %s1010 = sshll.u32 %s947, 4
          %s1011 = int_to_ptr.vmem [resolvable:$true] %s1010
          %1013 = dma.vmem_to_hbm [thread:$0]  %s1011, 128, %s1008, %s944
        $region96: #{tpu_custom_call.1} parent=59 // pred_fallthru
          _
        // Predicated region
        $region97: #{tpu_custom_call.1} parent=59 // pred_check
          %p1014 = pneg %p424
        $region98: #{tpu_custom_call.1} parent=59 // pred_check_branch
          %1016 = sbr.rel (%p1014) target = $region100
        $region99: #{tpu_custom_call.1} parent=59 // pred_region
          %s1018 = ssub.s32 128, 128
          %1019 = vsyncadd %s949, %s1018
          %s1020 = sadd.s32 %s51, %s50
          %s1021 = smul.addr %s1020, 128
          %s1022 = scalar_lea.hbm %s14, %s1021
          %s1024 = sshll.u32 %s952, 4
          %s1025 = int_to_ptr.vmem [resolvable:$true] %s1024
          %1027 = dma.vmem_to_hbm [thread:$0]  %s1025, 128, %s1022, %s949
        $region100: #{tpu_custom_call.1} parent=59 // pred_fallthru
          _
        // Predicated region
        $region101: #{tpu_custom_call.1} parent=59 // pred_check
          %p1028 = pneg %p452
        $region102: #{tpu_custom_call.1} parent=59 // pred_check_branch
          %1030 = sbr.rel (%p1028) target = $region104
        $region103: #{tpu_custom_call.1} parent=59 // pred_region
          %s1032 = ssub.s32 128, 128
          %1033 = vsyncadd %s954, %s1032
          %s1034 = sadd.s32 %s51, %s50
          %s1035 = smul.addr %s1034, 128
          %s1036 = scalar_lea.hbm %s15, %s1035
          %s1038 = sshll.u32 %s957, 4
          %s1039 = int_to_ptr.vmem [resolvable:$true] %s1038
          %1041 = dma.vmem_to_hbm [thread:$0]  %s1039, 128, %s1036, %s954
        $region104: #{tpu_custom_call.1} parent=59 // pred_fallthru
          _
      $region60: #{tpu_custom_call.1} parent=5 // pred_fallthru
        _
      %p1042 = scmp.le.s32.totalorder 2, %s41
      // Predicated region
      $region105: #{tpu_custom_call.1} parent=5 // pred_check
        %p1043 = pneg %p1042
      $region106: #{tpu_custom_call.1} parent=5 // pred_check_branch
        %1045 = sbr.rel (%p1043) target = $region108
      $region107: #{tpu_custom_call.1} parent=5 // pred_region
        %s1046 = ssub.s32 %s41, 2
        // Predicated region
        $region109: #{tpu_custom_call.1} parent=107 // pred_check
          %p1047 = pneg %p318
        $region110: #{tpu_custom_call.1} parent=107 // pred_check_branch
          %1049 = sbr.rel (%p1047) target = $region112
        $region111: #{tpu_custom_call.1} parent=107 // pred_region
          %s1050 = sand.u32 %s303, 1
          %s1051 = scalar_lea.sflag [#allocation4], %s1050
          %s1052 = sand.u32 %s303, 1
          %s1053 = smul.addr %s1052, 4
          %s1054 = scalar_lea.vmem [#allocation11], %s1053
          %1055 = dma.done %s1051, 64
        $region112: #{tpu_custom_call.1} parent=107 // pred_fallthru
          _
        // Predicated region
        $region113: #{tpu_custom_call.1} parent=107 // pred_check
          %p1056 = pneg %p346
        $region114: #{tpu_custom_call.1} parent=107 // pred_check_branch
          %1058 = sbr.rel (%p1056) target = $region116
        $region115: #{tpu_custom_call.1} parent=107 // pred_region
          %s1059 = sand.u32 %s47, 1
          %s1060 = scalar_lea.sflag [#allocation13], %s1059
          %s1061 = sand.u32 %s331, 1
          %s1062 = smul.addr %s1061, 4
          %s1063 = scalar_lea.vmem [#allocation12], %s1062
          %1064 = dma.done %s1060, 64
        $region116: #{tpu_custom_call.1} parent=107 // pred_fallthru
          _
        // Predicated region
        $region117: #{tpu_custom_call.1} parent=107 // pred_check
          %p1065 = pneg %p374
        $region118: #{tpu_custom_call.1} parent=107 // pred_check_branch
          %1067 = sbr.rel (%p1065) target = $region120
        $region119: #{tpu_custom_call.1} parent=107 // pred_region
          %s1068 = sand.u32 %s47, 1
          %s1069 = scalar_lea.sflag [#allocation13], %s1068
          %s1070 = sand.u32 %s359, 1
          %s1071 = smul.addr %s1070, 4
          %s1072 = scalar_lea.vmem [#allocation14], %s1071
          %1073 = dma.done %s1069, 64
        $region120: #{tpu_custom_call.1} parent=107 // pred_fallthru
          _
        // Predicated region
        $region121: #{tpu_custom_call.1} parent=107 // pred_check
          %p1074 = pneg %p402
        $region122: #{tpu_custom_call.1} parent=107 // pred_check_branch
          %1076 = sbr.rel (%p1074) target = $region124
        $region123: #{tpu_custom_call.1} parent=107 // pred_region
          %s1077 = sand.u32 %s47, 1
          %s1078 = scalar_lea.sflag [#allocation16], %s1077
          %s1079 = sand.u32 %s387, 1
          %s1080 = smul.addr %s1079, 8
          %s1081 = scalar_lea.vmem [#allocation15], %s1080
          %1082 = dma.done %s1078, 128
        $region124: #{tpu_custom_call.1} parent=107 // pred_fallthru
          _
        // Predicated region
        $region125: #{tpu_custom_call.1} parent=107 // pred_check
          %p1083 = pneg %p430
        $region126: #{tpu_custom_call.1} parent=107 // pred_check_branch
          %1085 = sbr.rel (%p1083) target = $region128
        $region127: #{tpu_custom_call.1} parent=107 // pred_region
          %s1086 = sand.u32 %s47, 1
          %s1087 = scalar_lea.sflag [#allocation16], %s1086
          %s1088 = sand.u32 %s415, 1
          %s1089 = smul.addr %s1088, 8
          %s1090 = scalar_lea.vmem [#allocation17], %s1089
          %1091 = dma.done %s1087, 128
        $region128: #{tpu_custom_call.1} parent=107 // pred_fallthru
          _
        // Predicated region
        $region129: #{tpu_custom_call.1} parent=107 // pred_check
          %p1092 = pneg %p458
        $region130: #{tpu_custom_call.1} parent=107 // pred_check_branch
          %1094 = sbr.rel (%p1092) target = $region132
        $region131: #{tpu_custom_call.1} parent=107 // pred_region
          %s1095 = sand.u32 %s443, 1
          %s1096 = scalar_lea.sflag [#allocation19], %s1095
          %s1097 = sand.u32 %s443, 1
          %s1098 = smul.addr %s1097, 8
          %s1099 = scalar_lea.vmem [#allocation18], %s1098
          %1100 = dma.done %s1096, 128
        $region132: #{tpu_custom_call.1} parent=107 // pred_fallthru
          _
      $region108: #{tpu_custom_call.1} parent=5 // pred_fallthru
        _
    $region6: #{tpu_custom_call.1} parent=1 // loop_footer
      %s45 = sadd.s32 1, %s41
    $region7: #{tpu_custom_call.1} parent=1 // loop_footer_branch
      %40 = sbr.rel target = $region3
    $region8: #{tpu_custom_call.1} parent=1 // loop_exit
      _
    %1101 = vsyncpa [#allocation3], 1
    %s1102 = scalar_lea.sflag [#allocation3], 1
    %1103 = vsyncpa %s1102, 1
    %1104 = vsyncpa [#allocation6], 1
    %s1105 = scalar_lea.sflag [#allocation6], 1
    %1106 = vsyncpa %s1105, 1
    %1107 = vsyncpa [#allocation9], 1
    %1108 = vsyncpa [#allocation4], 1
    %s1109 = scalar_lea.sflag [#allocation4], 1
    %1110 = vsyncpa %s1109, 1
    %1111 = vsyncpa [#allocation13], 1
    %s1112 = scalar_lea.sflag [#allocation13], 1
    %1113 = vsyncpa %s1112, 1
    %1114 = vsyncpa [#allocation16], 1
    %s1115 = scalar_lea.sflag [#allocation16], 1
    %1116 = vsyncpa %s1115, 1
    %1117 = vsyncpa [#allocation19], 1
    %s1118 = scalar_lea.sflag [#allocation19], 1
    %1119 = vsyncpa %s1118, 1

</llo_original>
